<compile_context>
chip_gen: v5e
topology: v5e:2x2
jax: 0.10.0
libtpu: 0.0.40
codegen_flags: <defaults>
</compile_context>

<pallas_src>
import functools

import jax
import jax.numpy as jnp
from jax.experimental import pallas as pl
from jax.experimental.pallas import tpu as pltpu

LANE = 128


def _round_up(v, m):
    return (v + m - 1) // m * m


def _pad2d(a, rows, cols, dtype=None):
    dtype = a.dtype if dtype is None else dtype
    out = jnp.zeros((rows, cols), dtype)
    return out.at[: a.shape[0], : a.shape[1]].set(a.astype(dtype))


def _pick_tile(m, target):
    """Largest multiple-of-128 divisor of m that is <= target (m % 128 == 0)."""
    q = m // LANE
    best = 1
    for d in range(1, q + 1):
        if q % d == 0 and d * LANE <= target:
            best = d
    return best * LANE


# ----------------------------------------------------------------------------
# Pallas kernels
# ----------------------------------------------------------------------------

def _mlp2_kernel(x_ref, w1_ref, b1_ref, w2_ref, b2_ref, o_ref):
    """Fused 2-layer MLP on a row tile: relu(x@W1 + b1) @ W2 + b2 (bf16 MXU)."""
    h = jnp.dot(x_ref[...], w1_ref[...], preferred_element_type=jnp.float32)
    h = jnp.maximum(h + b1_ref[...], 0.0).astype(jnp.bfloat16)
    o = jnp.dot(h, w2_ref[...], preferred_element_type=jnp.float32) + b2_ref[...]
    o_ref[...] = o.astype(o_ref.dtype)


def pallas_mlp2(x, w1, b1, w2, b2, *, row_tile, out_dtype=jnp.bfloat16):
    """x:(M,F) bf16 -> (M,Ho); M % row_tile == 0, feature dims 128-padded."""
    M, F = x.shape
    Hn = w1.shape[1]
    Ho = w2.shape[1]
    flops = 2 * M * F * Hn + 2 * M * Hn * Ho
    bytes_acc = (M * F * x.dtype.itemsize
                 + M * Ho * jnp.dtype(out_dtype).itemsize
                 + (F * Hn + Hn * Ho) * 2 + (Hn + Ho) * 4)
    return pl.pallas_call(
        _mlp2_kernel,
        out_shape=jax.ShapeDtypeStruct((M, Ho), out_dtype),
        grid=(M // row_tile,),
        in_specs=[
            pl.BlockSpec((row_tile, F), lambda i: (i, 0)),   # row tile of x
            pl.BlockSpec((F, Hn), lambda i: (0, 0)),         # weights: resident
            pl.BlockSpec((1, Hn), lambda i: (0, 0)),
            pl.BlockSpec((Hn, Ho), lambda i: (0, 0)),
            pl.BlockSpec((1, Ho), lambda i: (0, 0)),
        ],
        out_specs=pl.BlockSpec((row_tile, Ho), lambda i: (i, 0)),
        compiler_params=pltpu.CompilerParams(dimension_semantics=("parallel",)),
        cost_estimate=pl.CostEstimate(flops=flops, transcendentals=0,
                                      bytes_accessed=bytes_acc),
    )(x, w1, b1, w2, b2)


def _sage_layer_kernel(a_ref, xk_ref, xi_ref, invd_ref, ws_ref, wn_ref, b_ref,
                       o_ref, acc_ref, *, relu):
    """One (row-tile i, contraction-tile k) step of a fused SAGEConv('mean').

    a_ref   : (tm, tk) int8 tile of adjacency counts (self loops included)
    xk_ref  : (tk, Hp) bf16 X k-tile for the aggregation matmul
    xi_ref  : (tm, Hp) bf16 X i-tile for the self term (epilogue)
    invd_ref: (tm, 1)  f32  exact 1/deg per row
    acc_ref : (tm, Hp) f32 accumulator for A_cnt @ X
    """
    k = pl.program_id(1)
    nk = pl.num_programs(1)

    @pl.when(k == 0)
    def _():
        acc_ref[...] = jnp.zeros_like(acc_ref)

    a = a_ref[...].astype(jnp.bfloat16)  # int8 counts -> bf16 is exact (< 256)
    acc_ref[...] += jnp.dot(a, xk_ref[...], preferred_element_type=jnp.float32)

    @pl.when(k == nk - 1)
    def _():
        agg = (acc_ref[...] * invd_ref[...]).astype(jnp.bfloat16)  # exact f32 mean
        h = (jnp.dot(xi_ref[...], ws_ref[...], preferred_element_type=jnp.float32)
             + jnp.dot(agg, wn_ref[...], preferred_element_type=jnp.float32)
             + b_ref[...])
        if relu:
            h = jnp.maximum(h, 0.0)
        o_ref[...] = h.astype(o_ref.dtype)


def pallas_sage_layer(a_cnt, inv_deg, x, w_self, w_neigh, b, *,
                      relu=True, tm, tk, out_dtype=jnp.bfloat16):
    """h = (relu)(x @ W_self + ((A_cnt @ x) * 1/deg) @ W_neigh + b), tiled over A.

    a_cnt: (Np,Np) int8 counts; inv_deg: (Np,1) f32; x: (Np,Hp) bf16.
    X is streamed per k-tile (no resident full-X), so the only large VMEM users
    are the double-buffered A tile and the f32 accumulator.
    """
    Np = a_cnt.shape[0]
    Hp = x.shape[1]
    grid = (Np // tm, Np // tk)
    kern = functools.partial(_sage_layer_kernel, relu=relu)
    flops = 2 * Np * Np * Hp + 4 * Np * Hp * Hp
    bytes_acc = (Np * Np                                      # int8 A stream
                 + Np * Hp * 2 * (1 + Np // tm)               # xi once + xk per row tile
                 + Np * Hp * jnp.dtype(out_dtype).itemsize
                 + Np * 4 + 2 * Hp * Hp * 2 + Hp * 4)
    # Raise the scoped-VMEM limit only when the big tile is in play (safe on all
    # of v5e/v6e/v7x); small tiles fit comfortably under every default.
    vmem_limit = 32 * 1024 * 1024 if max(tm, tk) >= 2048 else None
    return pl.pallas_call(
        kern,
        out_shape=jax.ShapeDtypeStruct((Np, Hp), out_dtype),
        grid=grid,
        in_specs=[
            pl.BlockSpec((tm, tk), lambda i, k: (i, k)),     # A counts (streamed)
            pl.BlockSpec((tk, Hp), lambda i, k: (k, 0)),     # X k-tile (aggregation)
            pl.BlockSpec((tm, Hp), lambda i, k: (i, 0)),     # X i-tile (self term)
            pl.BlockSpec((tm, 1), lambda i, k: (i, 0)),      # 1/deg
            pl.BlockSpec((Hp, Hp), lambda i, k: (0, 0)),     # W_self
            pl.BlockSpec((Hp, Hp), lambda i, k: (0, 0)),     # W_neigh
            pl.BlockSpec((1, Hp), lambda i, k: (0, 0)),      # bias
        ],
        out_specs=pl.BlockSpec((tm, Hp), lambda i, k: (i, 0)),
        scratch_shapes=[pltpu.VMEM((tm, Hp), jnp.float32)],
        compiler_params=pltpu.CompilerParams(
            dimension_semantics=("parallel", "arbitrary"),
            vmem_limit_bytes=vmem_limit),
        cost_estimate=pl.CostEstimate(flops=flops, transcendentals=0,
                                      bytes_accessed=bytes_acc),
    )(a_cnt, x, x, inv_deg, w_self, w_neigh, b)


def _score_kernel(xu_ref, xv_ref, e_ref, w1u_ref, w1v_ref, w1e_ref, b1_ref,
                  w2_ref, b2_ref, o_ref):
    """Edge scores: W2 @ relu(xu@W1u + xv@W1v + e@W1e + b1) + b2 (no concat slab)."""
    h = (jnp.dot(xu_ref[...], w1u_ref[...], preferred_element_type=jnp.float32)
         + jnp.dot(xv_ref[...], w1v_ref[...], preferred_element_type=jnp.float32)
         + jnp.dot(e_ref[...], w1e_ref[...], preferred_element_type=jnp.float32)
         + b1_ref[...])
    h = jnp.maximum(h, 0.0).astype(jnp.bfloat16)
    o = jnp.dot(h, w2_ref[...], preferred_element_type=jnp.float32) + b2_ref[...]
    o_ref[...] = o.astype(o_ref.dtype)


def pallas_score(xu, xv, e, w1u, w1v, w1e, b1, w2, b2, *, row_tile):
    Ep, Hp = xu.shape
    Hs = w1u.shape[1]
    Ho = w2.shape[1]
    flops = 6 * Ep * Hp * Hs + 2 * Ep * Hs * Ho
    bytes_acc = (3 * Ep * Hp * 2 + Ep * Ho * 4
                 + (3 * Hp * Hs + Hs * Ho) * 2 + (Hs + Ho) * 4)
    return pl.pallas_call(
        _score_kernel,
        out_shape=jax.ShapeDtypeStruct((Ep, Ho), jnp.float32),
        grid=(Ep // row_tile,),
        in_specs=[
            pl.BlockSpec((row_tile, Hp), lambda i: (i, 0)),
            pl.BlockSpec((row_tile, Hp), lambda i: (i, 0)),
            pl.BlockSpec((row_tile, Hp), lambda i: (i, 0)),
            pl.BlockSpec((Hp, Hs), lambda i: (0, 0)),
            pl.BlockSpec((Hp, Hs), lambda i: (0, 0)),
            pl.BlockSpec((Hp, Hs), lambda i: (0, 0)),
            pl.BlockSpec((1, Hs), lambda i: (0, 0)),
            pl.BlockSpec((Hs, Ho), lambda i: (0, 0)),
            pl.BlockSpec((1, Ho), lambda i: (0, 0)),
        ],
        out_specs=pl.BlockSpec((row_tile, Ho), lambda i: (i, 0)),
        compiler_params=pltpu.CompilerParams(dimension_semantics=("parallel",)),
        cost_estimate=pl.CostEstimate(flops=flops, transcendentals=0,
                                      bytes_accessed=bytes_acc),
    )(xu, xv, e, w1u, w1v, w1e, b1, w2, b2)


# ----------------------------------------------------------------------------
# Parameter init (deterministic, in the TRUE model dims) + zero-padding to 128
# ----------------------------------------------------------------------------

def _init_linear(key, fan_in, fan_out):
    kw, kb = jax.random.split(key)
    w = jax.random.normal(kw, (fan_in, fan_out), jnp.float32) * (1.0 / jnp.sqrt(fan_in))
    b = jax.random.normal(kb, (fan_out,), jnp.float32) * 0.01
    return w, b


def init_params(key, node_features, edge_features, hidden_features,
                hidden_ne_features, num_layers, hidden_edge_scores):
    keys = jax.random.split(key, 6 + 2 * num_layers)
    p = {}
    p["ne_w1"], p["ne_b1"] = _init_linear(keys[0], node_features, hidden_ne_features)
    p["ne_w2"], p["ne_b2"] = _init_linear(keys[1], hidden_ne_features, hidden_features)
    p["ee_w1"], p["ee_b1"] = _init_linear(keys[2], edge_features, hidden_ne_features)
    p["ee_w2"], p["ee_b2"] = _init_linear(keys[3], hidden_ne_features, hidden_features)
    p["sage"] = []
    for l in range(num_layers):
        ws, b = _init_linear(keys[4 + 2 * l], hidden_features, hidden_features)
        wn, _ = _init_linear(keys[5 + 2 * l], hidden_features, hidden_features)
        p["sage"].append((ws, wn, b))
    p["sp_w1"], p["sp_b1"] = _init_linear(keys[-2], 3 * hidden_features, hidden_edge_scores)
    p["sp_w2"], p["sp_b2"] = _init_linear(keys[-1], hidden_edge_scores, 1)
    return p


def pad_params(p, node_features, edge_features, hidden_features,
               hidden_ne_features, hidden_edge_scores):
    """Zero-pad every feature dim to a multiple of 128 and cast weights to bf16.

    Zero padding preserves the forward pass exactly on the real slice; biases
    stay f32 (they are added in the f32 epilogue).
    """
    Fn = _round_up(node_features, LANE)
    Fe = _round_up(edge_features, LANE)
    Hn = _round_up(hidden_ne_features, LANE)
    H = _round_up(hidden_features, LANE)
    Hs = _round_up(hidden_edge_scores, LANE)
    bf = jnp.bfloat16
    q = {}
    q["ne_w1"] = _pad2d(p["ne_w1"], Fn, Hn, bf)
    q["ne_b1"] = _pad2d(p["ne_b1"].reshape(1, -1), 1, Hn)
    q["ne_w2"] = _pad2d(p["ne_w2"], Hn, H, bf)
    q["ne_b2"] = _pad2d(p["ne_b2"].reshape(1, -1), 1, H)
    q["ee_w1"] = _pad2d(p["ee_w1"], Fe, Hn, bf)
    q["ee_b1"] = _pad2d(p["ee_b1"].reshape(1, -1), 1, Hn)
    q["ee_w2"] = _pad2d(p["ee_w2"], Hn, H, bf)
    q["ee_b2"] = _pad2d(p["ee_b2"].reshape(1, -1), 1, H)

    q["sage"] = [(_pad2d(ws, H, H, bf), _pad2d(wn, H, H, bf),
                  _pad2d(b.reshape(1, -1), 1, H)) for (ws, wn, b) in p["sage"]]

    # score predictor: W1 acts on [x_u; x_v; e] — split into three H-blocks so
    # the concatenated z slab never has to be materialized.
    h, hs = hidden_features, hidden_edge_scores
    w1 = p["sp_w1"]
    q["sp_w1u"] = _pad2d(w1[0:h], H, Hs, bf)
    q["sp_w1v"] = _pad2d(w1[h:2 * h], H, Hs, bf)
    q["sp_w1e"] = _pad2d(w1[2 * h:3 * h], H, Hs, bf)
    q["sp_b1"] = _pad2d(p["sp_b1"].reshape(1, -1), 1, Hs)
    # lane-dense score output: pad the 1-wide output to 128 (real score = col 0)
    q["sp_w2"] = _pad2d(p["sp_w2"], Hs, LANE, bf)
    q["sp_b2"] = _pad2d(p["sp_b2"].reshape(1, -1), 1, LANE)
    return q


# ----------------------------------------------------------------------------
# Model forward
# ----------------------------------------------------------------------------

def sage_model_forward(params, src, dst, x, e, num_nodes,
                       *, sage_tile_max=2048, enc_tile_max=512):
    """src/dst: (E,) int32 endpoints of the original (directed) graph."""
    N = num_nodes
    E = src.shape[0]
    # Padded feature dims are STATIC python ints read off the weight shapes
    # (storing them as dict entries made them tracers under jit — the old bug).
    Fn = params["ne_w1"].shape[0]
    Fe = params["ee_w1"].shape[0]
    Hp = params["ne_w2"].shape[1]

    Np = _round_up(max(N, 1), LANE)
    if Np > sage_tile_max:
        Np = _round_up(N, sage_tile_max)
    Ep = _round_up(max(E, 1), LANE)
    if Ep > enc_tile_max:
        Ep = _round_up(E, enc_tile_max)
    tm = tk = _pick_tile(Np, sage_tile_max)
    tile_n = _pick_tile(Np, enc_tile_max)
    tile_e = _pick_tile(Ep, enc_tile_max)

    # --- graph glue: int8 in-adjacency COUNTS with self loops, scattered once
    # directly into the padded slab; degrees via segment-sum on dst.  The exact
    # 1/deg normalization is folded into the SAGE kernel epilogue (f32).
    # Note: like dgl.add_self_loop, an existing (u,u) edge ends up with count 2.
    diag = jnp.arange(N, dtype=jnp.int32)
    a_cnt = jnp.zeros((Np, Np), jnp.int8)
    a_cnt = a_cnt.at[dst, src].add(jnp.int8(1))
    a_cnt = a_cnt.at[diag, diag].add(jnp.int8(1))
    deg = jnp.zeros((Np,), jnp.float32).at[dst].add(1.0).at[diag].add(1.0)
    inv_deg = jnp.where(deg > 0.0, 1.0 / deg, 0.0).reshape(Np, 1)
    # TODO(synk): for a static graph, cache (a_cnt, inv_deg) across forward calls
    #             (or use a sparse CSR gather kernel) instead of rebuilding here.

    x_pad = _pad2d(x, Np, Fn, jnp.bfloat16)
    e_pad = _pad2d(e, Ep, Fe, jnp.bfloat16)

    # --- encoders: fused 2-layer MLP kernels (ReLU between layers), bf16 out
    xh = pallas_mlp2(x_pad, params["ne_w1"], params["ne_b1"],
                     params["ne_w2"], params["ne_b2"], row_tile=tile_n)
    eh = pallas_mlp2(e_pad, params["ee_w1"], params["ee_b1"],
                     params["ee_w2"], params["ee_b2"], row_tile=tile_e)

    # --- SAGE processor (edge features pass through unchanged)
    for (w_self, w_neigh, b) in params["sage"]:
        xh = pallas_sage_layer(a_cnt, inv_deg, xh, w_self, w_neigh, b,
                               relu=True, tm=tm, tk=tk)

    # --- score predictor on the ORIGINAL edges: W2 @ relu(W1 @ [x_u; x_v; e]) + b
    src_p = jnp.zeros((Ep,), jnp.int32).at[:E].set(src)
    dst_p = jnp.zeros((Ep,), jnp.int32).at[:E].set(dst)
    xu = xh[src_p]   # (Ep, Hp) bf16 row gathers
    xv = xh[dst_p]
    # TODO(synk): for very large E, move the per-edge gather into the score
    #             kernel (PrefetchScalarGridSpec(src,dst)-driven DMA) instead of
    #             materializing xu/xv via XLA gather.
    scores_pad = pallas_score(xu, xv, eh,
                              params["sp_w1u"], params["sp_w1v"], params["sp_w1e"],
                              params["sp_b1"], params["sp_w2"], params["sp_b2"],
                              row_tile=tile_e)
    return scores_pad[:E, :1]


# ----------------------------------------------------------------------------
# Main
# ----------------------------------------------------------------------------

if __name__ == "__main__":
    # small, forward-consistent shapes
    NODE_FEATURES = 4
    EDGE_FEATURES = 2
    HIDDEN_FEATURES = 32
    HIDDEN_NE_FEATURES = 16
    NUM_LAYERS = 2
    HIDDEN_EDGE_SCORES = 16
    N_NODES = 16
    N_EDGES = 32

    key = jax.random.PRNGKey(0)
    k_graph, k_x, k_e, k_params = jax.random.split(key, 4)
    k_src, k_dst = jax.random.split(k_graph)

    src = jax.random.randint(k_src, (N_EDGES,), 0, N_NODES, dtype=jnp.int32)
    dst = jax.random.randint(k_dst, (N_EDGES,), 0, N_NODES, dtype=jnp.int32)
    x = jax.random.normal(k_x, (N_NODES, NODE_FEATURES), jnp.float32)
    e = jax.random.normal(k_e, (N_EDGES, EDGE_FEATURES), jnp.float32)

    raw_params = init_params(k_params, NODE_FEATURES, EDGE_FEATURES,
                             HIDDEN_FEATURES, HIDDEN_NE_FEATURES,
                             NUM_LAYERS, HIDDEN_EDGE_SCORES)
    params = pad_params(raw_params, NODE_FEATURES, EDGE_FEATURES,
                        HIDDEN_FEATURES, HIDDEN_NE_FEATURES, HIDDEN_EDGE_SCORES)

    fwd = jax.jit(functools.partial(sage_model_forward, num_nodes=N_NODES))
    scores = fwd(params, src, dst, x, e)
    jax.block_until_ready(scores)
    assert scores.shape == (N_EDGES, 1) and scores.dtype == jnp.float32
    assert bool(jnp.all(jnp.isfinite(scores)))
    print("KERNEL_OK")
</pallas_src>

<mosaic_0001>
module attributes {stable_mosaic.version = 11 : i64} {
  func.func @_mlp2_kernel(%arg0: i32, %arg1: memref<128x128xbf16, #tpu.memory_space<vmem>>, %arg2: memref<128x128xbf16, #tpu.memory_space<vmem>>, %arg3: memref<1x128xf32, #tpu.memory_space<vmem>>, %arg4: memref<128x128xbf16, #tpu.memory_space<vmem>>, %arg5: memref<1x128xf32, #tpu.memory_space<vmem>>, %arg6: memref<128x128xbf16, #tpu.memory_space<vmem>>) attributes {dimension_semantics = [#tpu.dimension_semantics<parallel>], iteration_bounds = array<i64: 1>, scalar_prefetch = 0 : i64, scratch_operands = 0 : i64, tpu.core_type = #tpu.core_type<tc>, window_params = [{transform_indices = @transform_0, window_bounds = array<i64: 128, 128>}, {pipeline_mode = #tpu.pipeline_mode<synchronous>, transform_indices = @transform_1, window_bounds = array<i64: 128, 128>}, {pipeline_mode = #tpu.pipeline_mode<synchronous>, transform_indices = @transform_2, window_bounds = array<i64: 1, 128>}, {pipeline_mode = #tpu.pipeline_mode<synchronous>, transform_indices = @transform_3, window_bounds = array<i64: 128, 128>}, {pipeline_mode = #tpu.pipeline_mode<synchronous>, transform_indices = @transform_4, window_bounds = array<i64: 1, 128>}, {transform_indices = @transform_5, window_bounds = array<i64: 128, 128>}]} {
    %c0 = arith.constant 0 : index
    %c0_0 = arith.constant 0 : index
    %0 = vector.load %arg1[%c0, %c0_0] : memref<128x128xbf16, #tpu.memory_space<vmem>>, vector<128x128xbf16>
    %c0_1 = arith.constant 0 : index
    %c0_2 = arith.constant 0 : index
    %1 = vector.load %arg2[%c0_1, %c0_2] : memref<128x128xbf16, #tpu.memory_space<vmem>>, vector<128x128xbf16>
    %cst = arith.constant dense<0.000000e+00> : vector<128x128xf32>
    %2 = tpu.matmul %0, %1, %cst {dimension_numbers = #tpu.dot_dimension_numbers<[1], [0], [0], [1], [0, 0, 1, 1], [], []>} : vector<128x128xbf16>, vector<128x128xbf16>, vector<128x128xf32> -> vector<128x128xf32>
    %c0_3 = arith.constant 0 : index
    %c0_4 = arith.constant 0 : index
    %3 = vector.load %arg3[%c0_3, %c0_4] : memref<1x128xf32, #tpu.memory_space<vmem>>, vector<1x128xf32>
    %4 = vector.broadcast %3 : vector<1x128xf32> to vector<128x128xf32>
    %5 = arith.addf %2, %4 : vector<128x128xf32>
    %cst_5 = arith.constant 0.000000e+00 : f32
    %6 = vector.broadcast %cst_5 : f32 to vector<128x128xf32>
    %7 = arith.maximumf %5, %6 : vector<128x128xf32>
    %8 = arith.truncf %7 : vector<128x128xf32> to vector<128x128xbf16>
    %c0_6 = arith.constant 0 : index
    %c0_7 = arith.constant 0 : index
    %9 = vector.load %arg4[%c0_6, %c0_7] : memref<128x128xbf16, #tpu.memory_space<vmem>>, vector<128x128xbf16>
    %cst_8 = arith.constant dense<0.000000e+00> : vector<128x128xf32>
    %10 = tpu.matmul %8, %9, %cst_8 {dimension_numbers = #tpu.dot_dimension_numbers<[1], [0], [0], [1], [0, 0, 1, 1], [], []>} : vector<128x128xbf16>, vector<128x128xbf16>, vector<128x128xf32> -> vector<128x128xf32>
    %c0_9 = arith.constant 0 : index
    %c0_10 = arith.constant 0 : index
    %11 = vector.load %arg5[%c0_9, %c0_10] : memref<1x128xf32, #tpu.memory_space<vmem>>, vector<1x128xf32>
    %12 = vector.broadcast %11 : vector<1x128xf32> to vector<128x128xf32>
    %13 = arith.addf %10, %12 : vector<128x128xf32>
    %14 = arith.truncf %13 : vector<128x128xf32> to vector<128x128xbf16>
    %c0_11 = arith.constant 0 : index
    %c0_12 = arith.constant 0 : index
    %15 = vector.load %arg6[%c0_11, %c0_12] : memref<128x128xbf16, #tpu.memory_space<vmem>>, vector<128x128xbf16>
    tpu.vector_store %arg6[%c0_11, %c0_12], %14 {strides = array<i32>} : memref<128x128xbf16, #tpu.memory_space<vmem>>, vector<128x128xbf16>,
    return
  }
  func.func @transform_0(%arg0: i32) -> (i32, i32) {
    %c0_i32 = arith.constant 0 : i32
    %c0_i32_0 = arith.constant 0 : i32
    return %arg0, %c0_i32 : i32, i32
  }
  func.func @transform_1(%arg0: i32) -> (i32, i32) {
    %c0_i32 = arith.constant 0 : i32
    %c0_i32_0 = arith.constant 0 : i32
    %c0_i32_1 = arith.constant 0 : i32
    return %c0_i32, %c0_i32_0 : i32, i32
  }
  func.func @transform_2(%arg0: i32) -> (i32, i32) {
    %c0_i32 = arith.constant 0 : i32
    %c0_i32_0 = arith.constant 0 : i32
    %c0_i32_1 = arith.constant 0 : i32
    return %c0_i32, %c0_i32_0 : i32, i32
  }
  func.func @transform_3(%arg0: i32) -> (i32, i32) {
    %c0_i32 = arith.constant 0 : i32
    %c0_i32_0 = arith.constant 0 : i32
    %c0_i32_1 = arith.constant 0 : i32
    return %c0_i32, %c0_i32_0 : i32, i32
  }
  func.func @transform_4(%arg0: i32) -> (i32, i32) {
    %c0_i32 = arith.constant 0 : i32
    %c0_i32_0 = arith.constant 0 : i32
    %c0_i32_1 = arith.constant 0 : i32
    return %c0_i32, %c0_i32_0 : i32, i32
  }
  func.func @transform_5(%arg0: i32) -> (i32, i32) {
    %c0_i32 = arith.constant 0 : i32
    %c0_i32_0 = arith.constant 0 : i32
    return %arg0, %c0_i32 : i32, i32
  }
}

module attributes {stable_mosaic.version = 11 : i64} {
  func.func @_sage_layer_kernel(%arg0: i32, %arg1: i32, %arg2: memref<128x128xi8, #tpu.memory_space<vmem>>, %arg3: memref<128x128xbf16, #tpu.memory_space<vmem>>, %arg4: memref<128x128xbf16, #tpu.memory_space<vmem>>, %arg5: memref<128x1xf32, #tpu.memory_space<vmem>>, %arg6: memref<128x128xbf16, #tpu.memory_space<vmem>>, %arg7: memref<128x128xbf16, #tpu.memory_space<vmem>>, %arg8: memref<1x128xf32, #tpu.memory_space<vmem>>, %arg9: memref<128x128xbf16, #tpu.memory_space<vmem>>, %arg10: memref<128x128xf32, #tpu.memory_space<vmem>>) attributes {dimension_semantics = [#tpu.dimension_semantics<parallel>, #tpu.dimension_semantics<arbitrary>], iteration_bounds = array<i64: 1, 1>, scalar_prefetch = 0 : i64, scratch_operands = 1 : i64, tpu.core_type = #tpu.core_type<tc>, window_params = [{transform_indices = @transform_0, window_bounds = array<i64: 128, 128>}, {transform_indices = @transform_1, window_bounds = array<i64: 128, 128>}, {transform_indices = @transform_2, window_bounds = array<i64: 128, 128>}, {transform_indices = @transform_3, window_bounds = array<i64: 128, 1>}, {pipeline_mode = #tpu.pipeline_mode<synchronous>, transform_indices = @transform_4, window_bounds = array<i64: 128, 128>}, {pipeline_mode = #tpu.pipeline_mode<synchronous>, transform_indices = @transform_5, window_bounds = array<i64: 128, 128>}, {pipeline_mode = #tpu.pipeline_mode<synchronous>, transform_indices = @transform_6, window_bounds = array<i64: 1, 128>}, {transform_indices = @transform_7, window_bounds = array<i64: 128, 128>}]} {
    %c0_i32 = arith.constant 0 : i32
    %0 = arith.cmpi eq, %arg1, %c0_i32 : i32
    %1 = arith.extui %0 : i1 to i32
    %c0_i32_0 = arith.constant 0 : i32
    %2 = arith.cmpi ne, %1, %c0_i32_0 : i32
    scf.if %2 {
      %cst_10 = arith.constant 0.000000e+00 : f32
      %13 = vector.broadcast %cst_10 : f32 to vector<128x128xf32>
      %c0_11 = arith.constant 0 : index
      %c0_12 = arith.constant 0 : index
      %14 = vector.load %arg10[%c0_11, %c0_12] : memref<128x128xf32, #tpu.memory_space<vmem>>, vector<128x128xf32>
      tpu.vector_store %arg10[%c0_11, %c0_12], %13 {strides = array<i32>} : memref<128x128xf32, #tpu.memory_space<vmem>>, vector<128x128xf32>,
    } else {
    }
    %c0 = arith.constant 0 : index
    %c0_1 = arith.constant 0 : index
    %3 = vector.load %arg2[%c0, %c0_1] : memref<128x128xi8, #tpu.memory_space<vmem>>, vector<128x128xi8>
    %4 = arith.sitofp %3 : vector<128x128xi8> to vector<128x128xbf16>
    %c0_2 = arith.constant 0 : index
    %c0_3 = arith.constant 0 : index
    %5 = vector.load %arg10[%c0_2, %c0_3] : memref<128x128xf32, #tpu.memory_space<vmem>>, vector<128x128xf32>
    %c0_4 = arith.constant 0 : index
    %c0_5 = arith.constant 0 : index
    %6 = vector.load %arg3[%c0_4, %c0_5] : memref<128x128xbf16, #tpu.memory_space<vmem>>, vector<128x128xbf16>
    %cst = arith.constant dense<0.000000e+00> : vector<128x128xf32>
    %7 = tpu.matmul %4, %6, %cst {dimension_numbers = #tpu.dot_dimension_numbers<[1], [0], [0], [1], [0, 0, 1, 1], [], []>} : vector<128x128xbf16>, vector<128x128xbf16>, vector<128x128xf32> -> vector<128x128xf32>
    %8 = arith.addf %5, %7 : vector<128x128xf32>
    %c0_6 = arith.constant 0 : index
    %c0_7 = arith.constant 0 : index
    %9 = vector.load %arg10[%c0_6, %c0_7] : memref<128x128xf32, #tpu.memory_space<vmem>>, vector<128x128xf32>
    tpu.vector_store %arg10[%c0_6, %c0_7], %8 {strides = array<i32>} : memref<128x128xf32, #tpu.memory_space<vmem>>, vector<128x128xf32>,
    %c0_i32_8 = arith.constant 0 : i32
    %10 = arith.cmpi eq, %arg1, %c0_i32_8 : i32
    %11 = arith.extui %10 : i1 to i32
    %c0_i32_9 = arith.constant 0 : i32
    %12 = arith.cmpi ne, %11, %c0_i32_9 : i32
    scf.if %12 {
      %c0_10 = arith.constant 0 : index
      %c0_11 = arith.constant 0 : index
      %13 = vector.load %arg10[%c0_10, %c0_11] : memref<128x128xf32, #tpu.memory_space<vmem>>, vector<128x128xf32>
      %c0_12 = arith.constant 0 : index
      %c0_13 = arith.constant 0 : index
      %14 = vector.load %arg5[%c0_12, %c0_13] : memref<128x1xf32, #tpu.memory_space<vmem>>, vector<128x1xf32>
      %15 = vector.broadcast %14 : vector<128x1xf32> to vector<128x128xf32>
      %16 = arith.mulf %13, %15 : vector<128x128xf32>
      %17 = arith.truncf %16 : vector<128x128xf32> to vector<128x128xbf16>
      %c0_14 = arith.constant 0 : index
      %c0_15 = arith.constant 0 : index
      %18 = vector.load %arg4[%c0_14, %c0_15] : memref<128x128xbf16, #tpu.memory_space<vmem>>, vector<128x128xbf16>
      %c0_16 = arith.constant 0 : index
      %c0_17 = arith.constant 0 : index
      %19 = vector.load %arg6[%c0_16, %c0_17] : memref<128x128xbf16, #tpu.memory_space<vmem>>, vector<128x128xbf16>
      %cst_18 = arith.constant dense<0.000000e+00> : vector<128x128xf32>
      %20 = tpu.matmul %18, %19, %cst_18 {dimension_numbers = #tpu.dot_dimension_numbers<[1], [0], [0], [1], [0, 0, 1, 1], [], []>} : vector<128x128xbf16>, vector<128x128xbf16>, vector<128x128xf32> -> vector<128x128xf32>
      %c0_19 = arith.constant 0 : index
      %c0_20 = arith.constant 0 : index
      %21 = vector.load %arg7[%c0_19, %c0_20] : memref<128x128xbf16, #tpu.memory_space<vmem>>, vector<128x128xbf16>
      %cst_21 = arith.constant dense<0.000000e+00> : vector<128x128xf32>
      %22 = tpu.matmul %17, %21, %cst_21 {dimension_numbers = #tpu.dot_dimension_numbers<[1], [0], [0], [1], [0, 0, 1, 1], [], []>} : vector<128x128xbf16>, vector<128x128xbf16>, vector<128x128xf32> -> vector<128x128xf32>
      %23 = arith.addf %20, %22 : vector<128x128xf32>
      %c0_22 = arith.constant 0 : index
      %c0_23 = arith.constant 0 : index
      %24 = vector.load %arg8[%c0_22, %c0_23] : memref<1x128xf32, #tpu.memory_space<vmem>>, vector<1x128xf32>
      %25 = vector.broadcast %24 : vector<1x128xf32> to vector<128x128xf32>
      %26 = arith.addf %23, %25 : vector<128x128xf32>
      %cst_24 = arith.constant 0.000000e+00 : f32
      %27 = vector.broadcast %cst_24 : f32 to vector<128x128xf32>
      %28 = arith.maximumf %26, %27 : vector<128x128xf32>
      %29 = arith.truncf %28 : vector<128x128xf32> to vector<128x128xbf16>
      %c0_25 = arith.constant 0 : index
      %c0_26 = arith.constant 0 : index
      %30 = vector.load %arg9[%c0_25, %c0_26] : memref<128x128xbf16, #tpu.memory_space<vmem>>, vector<128x128xbf16>
      tpu.vector_store %arg9[%c0_25, %c0_26], %29 {strides = array<i32>} : memref<128x128xbf16, #tpu.memory_space<vmem>>, vector<128x128xbf16>,
    } else {
    }
    return
  }
  func.func @transform_0(%arg0: i32, %arg1: i32) -> (i32, i32) {
    %c0_i32 = arith.constant 0 : i32
    return %arg0, %arg1 : i32, i32
  }
  func.func @transform_1(%arg0: i32, %arg1: i32) -> (i32, i32) {
    %c0_i32 = arith.constant 0 : i32
    %c0_i32_0 = arith.constant 0 : i32
    return %arg1, %c0_i32 : i32, i32
  }
  func.func @transform_2(%arg0: i32, %arg1: i32) -> (i32, i32) {
    %c0_i32 = arith.constant 0 : i32
    %c0_i32_0 = arith.constant 0 : i32
    return %arg0, %c0_i32 : i32, i32
  }
  func.func @transform_3(%arg0: i32, %arg1: i32) -> (i32, i32) {
    %c0_i32 = arith.constant 0 : i32
    %c0_i32_0 = arith.constant 0 : i32
    return %arg0, %c0_i32 : i32, i32
  }
  func.func @transform_4(%arg0: i32, %arg1: i32) -> (i32, i32) {
    %c0_i32 = arith.constant 0 : i32
    %c0_i32_0 = arith.constant 0 : i32
    %c0_i32_1 = arith.constant 0 : i32
    return %c0_i32, %c0_i32_0 : i32, i32
  }
  func.func @transform_5(%arg0: i32, %arg1: i32) -> (i32, i32) {
    %c0_i32 = arith.constant 0 : i32
    %c0_i32_0 = arith.constant 0 : i32
    %c0_i32_1 = arith.constant 0 : i32
    return %c0_i32, %c0_i32_0 : i32, i32
  }
  func.func @transform_6(%arg0: i32, %arg1: i32) -> (i32, i32) {
    %c0_i32 = arith.constant 0 : i32
    %c0_i32_0 = arith.constant 0 : i32
    %c0_i32_1 = arith.constant 0 : i32
    return %c0_i32, %c0_i32_0 : i32, i32
  }
  func.func @transform_7(%arg0: i32, %arg1: i32) -> (i32, i32) {
    %c0_i32 = arith.constant 0 : i32
    %c0_i32_0 = arith.constant 0 : i32
    return %arg0, %c0_i32 : i32, i32
  }
}

module attributes {stable_mosaic.version = 11 : i64} {
  func.func @_score_kernel(%arg0: i32, %arg1: memref<128x128xbf16, #tpu.memory_space<vmem>>, %arg2: memref<128x128xbf16, #tpu.memory_space<vmem>>, %arg3: memref<128x128xbf16, #tpu.memory_space<vmem>>, %arg4: memref<128x128xbf16, #tpu.memory_space<vmem>>, %arg5: memref<128x128xbf16, #tpu.memory_space<vmem>>, %arg6: memref<128x128xbf16, #tpu.memory_space<vmem>>, %arg7: memref<1x128xf32, #tpu.memory_space<vmem>>, %arg8: memref<128x128xbf16, #tpu.memory_space<vmem>>, %arg9: memref<1x128xf32, #tpu.memory_space<vmem>>, %arg10: memref<128x128xf32, #tpu.memory_space<vmem>>) attributes {dimension_semantics = [#tpu.dimension_semantics<parallel>], iteration_bounds = array<i64: 1>, scalar_prefetch = 0 : i64, scratch_operands = 0 : i64, tpu.core_type = #tpu.core_type<tc>, window_params = [{transform_indices = @transform_0, window_bounds = array<i64: 128, 128>}, {transform_indices = @transform_1, window_bounds = array<i64: 128, 128>}, {transform_indices = @transform_2, window_bounds = array<i64: 128, 128>}, {pipeline_mode = #tpu.pipeline_mode<synchronous>, transform_indices = @transform_3, window_bounds = array<i64: 128, 128>}, {pipeline_mode = #tpu.pipeline_mode<synchronous>, transform_indices = @transform_4, window_bounds = array<i64: 128, 128>}, {pipeline_mode = #tpu.pipeline_mode<synchronous>, transform_indices = @transform_5, window_bounds = array<i64: 128, 128>}, {pipeline_mode = #tpu.pipeline_mode<synchronous>, transform_indices = @transform_6, window_bounds = array<i64: 1, 128>}, {pipeline_mode = #tpu.pipeline_mode<synchronous>, transform_indices = @transform_7, window_bounds = array<i64: 128, 128>}, {pipeline_mode = #tpu.pipeline_mode<synchronous>, transform_indices = @transform_8, window_bounds = array<i64: 1, 128>}, {transform_indices = @transform_9, window_bounds = array<i64: 128, 128>}]} {
    %c0 = arith.constant 0 : index
    %c0_0 = arith.constant 0 : index
    %0 = vector.load %arg1[%c0, %c0_0] : memref<128x128xbf16, #tpu.memory_space<vmem>>, vector<128x128xbf16>
    %c0_1 = arith.constant 0 : index
    %c0_2 = arith.constant 0 : index
    %1 = vector.load %arg4[%c0_1, %c0_2] : memref<128x128xbf16, #tpu.memory_space<vmem>>, vector<128x128xbf16>
    %cst = arith.constant dense<0.000000e+00> : vector<128x128xf32>
    %2 = tpu.matmul %0, %1, %cst {dimension_numbers = #tpu.dot_dimension_numbers<[1], [0], [0], [1], [0, 0, 1, 1], [], []>} : vector<128x128xbf16>, vector<128x128xbf16>, vector<128x128xf32> -> vector<128x128xf32>
    %c0_3 = arith.constant 0 : index
    %c0_4 = arith.constant 0 : index
    %3 = vector.load %arg2[%c0_3, %c0_4] : memref<128x128xbf16, #tpu.memory_space<vmem>>, vector<128x128xbf16>
    %c0_5 = arith.constant 0 : index
    %c0_6 = arith.constant 0 : index
    %4 = vector.load %arg5[%c0_5, %c0_6] : memref<128x128xbf16, #tpu.memory_space<vmem>>, vector<128x128xbf16>
    %cst_7 = arith.constant dense<0.000000e+00> : vector<128x128xf32>
    %5 = tpu.matmul %3, %4, %cst_7 {dimension_numbers = #tpu.dot_dimension_numbers<[1], [0], [0], [1], [0, 0, 1, 1], [], []>} : vector<128x128xbf16>, vector<128x128xbf16>, vector<128x128xf32> -> vector<128x128xf32>
    %6 = arith.addf %2, %5 : vector<128x128xf32>
    %c0_8 = arith.constant 0 : index
    %c0_9 = arith.constant 0 : index
    %7 = vector.load %arg3[%c0_8, %c0_9] : memref<128x128xbf16, #tpu.memory_space<vmem>>, vector<128x128xbf16>
    %c0_10 = arith.constant 0 : index
    %c0_11 = arith.constant 0 : index
    %8 = vector.load %arg6[%c0_10, %c0_11] : memref<128x128xbf16, #tpu.memory_space<vmem>>, vector<128x128xbf16>
    %cst_12 = arith.constant dense<0.000000e+00> : vector<128x128xf32>
    %9 = tpu.matmul %7, %8, %cst_12 {dimension_numbers = #tpu.dot_dimension_numbers<[1], [0], [0], [1], [0, 0, 1, 1], [], []>} : vector<128x128xbf16>, vector<128x128xbf16>, vector<128x128xf32> -> vector<128x128xf32>
    %10 = arith.addf %6, %9 : vector<128x128xf32>
    %c0_13 = arith.constant 0 : index
    %c0_14 = arith.constant 0 : index
    %11 = vector.load %arg7[%c0_13, %c0_14] : memref<1x128xf32, #tpu.memory_space<vmem>>, vector<1x128xf32>
    %12 = vector.broadcast %11 : vector<1x128xf32> to vector<128x128xf32>
    %13 = arith.addf %10, %12 : vector<128x128xf32>
    %cst_15 = arith.constant 0.000000e+00 : f32
    %14 = vector.broadcast %cst_15 : f32 to vector<128x128xf32>
    %15 = arith.maximumf %13, %14 : vector<128x128xf32>
    %16 = arith.truncf %15 : vector<128x128xf32> to vector<128x128xbf16>
    %c0_16 = arith.constant 0 : index
    %c0_17 = arith.constant 0 : index
    %17 = vector.load %arg8[%c0_16, %c0_17] : memref<128x128xbf16, #tpu.memory_space<vmem>>, vector<128x128xbf16>
    %cst_18 = arith.constant dense<0.000000e+00> : vector<128x128xf32>
    %18 = tpu.matmul %16, %17, %cst_18 {dimension_numbers = #tpu.dot_dimension_numbers<[1], [0], [0], [1], [0, 0, 1, 1], [], []>} : vector<128x128xbf16>, vector<128x128xbf16>, vector<128x128xf32> -> vector<128x128xf32>
    %c0_19 = arith.constant 0 : index
    %c0_20 = arith.constant 0 : index
    %19 = vector.load %arg9[%c0_19, %c0_20] : memref<1x128xf32, #tpu.memory_space<vmem>>, vector<1x128xf32>
    %20 = vector.broadcast %19 : vector<1x128xf32> to vector<128x128xf32>
    %21 = arith.addf %18, %20 : vector<128x128xf32>
    %c0_21 = arith.constant 0 : index
    %c0_22 = arith.constant 0 : index
    %22 = vector.load %arg10[%c0_21, %c0_22] : memref<128x128xf32, #tpu.memory_space<vmem>>, vector<128x128xf32>
    tpu.vector_store %arg10[%c0_21, %c0_22], %21 {strides = array<i32>} : memref<128x128xf32, #tpu.memory_space<vmem>>, vector<128x128xf32>,
    return
  }
  func.func @transform_0(%arg0: i32) -> (i32, i32) {
    %c0_i32 = arith.constant 0 : i32
    %c0_i32_0 = arith.constant 0 : i32
    return %arg0, %c0_i32 : i32, i32
  }
  func.func @transform_1(%arg0: i32) -> (i32, i32) {
    %c0_i32 = arith.constant 0 : i32
    %c0_i32_0 = arith.constant 0 : i32
    return %arg0, %c0_i32 : i32, i32
  }
  func.func @transform_2(%arg0: i32) -> (i32, i32) {
    %c0_i32 = arith.constant 0 : i32
    %c0_i32_0 = arith.constant 0 : i32
    return %arg0, %c0_i32 : i32, i32
  }
  func.func @transform_3(%arg0: i32) -> (i32, i32) {
    %c0_i32 = arith.constant 0 : i32
    %c0_i32_0 = arith.constant 0 : i32
    %c0_i32_1 = arith.constant 0 : i32
    return %c0_i32, %c0_i32_0 : i32, i32
  }
  func.func @transform_4(%arg0: i32) -> (i32, i32) {
    %c0_i32 = arith.constant 0 : i32
    %c0_i32_0 = arith.constant 0 : i32
    %c0_i32_1 = arith.constant 0 : i32
    return %c0_i32, %c0_i32_0 : i32, i32
  }
  func.func @transform_5(%arg0: i32) -> (i32, i32) {
    %c0_i32 = arith.constant 0 : i32
    %c0_i32_0 = arith.constant 0 : i32
    %c0_i32_1 = arith.constant 0 : i32
    return %c0_i32, %c0_i32_0 : i32, i32
  }
  func.func @transform_6(%arg0: i32) -> (i32, i32) {
    %c0_i32 = arith.constant 0 : i32
    %c0_i32_0 = arith.constant 0 : i32
    %c0_i32_1 = arith.constant 0 : i32
    return %c0_i32, %c0_i32_0 : i32, i32
  }
  func.func @transform_7(%arg0: i32) -> (i32, i32) {
    %c0_i32 = arith.constant 0 : i32
    %c0_i32_0 = arith.constant 0 : i32
    %c0_i32_1 = arith.constant 0 : i32
    return %c0_i32, %c0_i32_0 : i32, i32
  }
  func.func @transform_8(%arg0: i32) -> (i32, i32) {
    %c0_i32 = arith.constant 0 : i32
    %c0_i32_0 = arith.constant 0 : i32
    %c0_i32_1 = arith.constant 0 : i32
    return %c0_i32, %c0_i32_0 : i32, i32
  }
  func.func @transform_9(%arg0: i32) -> (i32, i32) {
    %c0_i32 = arith.constant 0 : i32
    %c0_i32_0 = arith.constant 0 : i32
    return %arg0, %c0_i32 : i32, i32
  }
}

</mosaic_0001>

<llo_original>
// kernel: sage_model_forward.5
$region0: #{sage_model_forward.5}
  #allocation0 [shape = 'u32[]', space=smem, size = 0x4, offset = 0x4, fixed_abs, tag = 'smem constant byte address 0x4 - core index']
  #allocation1 [shape = 'u32[72,128]{1,0:T(1,128)}', space=vmem, size = 0x9000, scoped, tag = 'internal scratch']
  %s0 = inlined_call_operand.vmem [shape: bf16[128,128], index: 0, kind: input, shape index: {}]
  %s1 = inlined_call_operand.vmem [shape: bf16[128,128], index: 1, kind: input, shape index: {}]
  %s2 = inlined_call_operand.vmem [shape: f32[1,128], index: 2, kind: input, shape index: {}]
  %s3 = inlined_call_operand.vmem [shape: bf16[128,128], index: 3, kind: input, shape index: {}]
  %s4 = inlined_call_operand.vmem [shape: f32[1,128], index: 4, kind: input, shape index: {}]
  %s5 = inlined_call_operand.vmem [shape: bf16[128,128], index: 5, kind: output, shape index: {}]
  %s6 = sld [smem:[#allocation0]]
  $region30: #{sage_model_forward.5} parent=0
    _
  %s8 = ssub.s32 1, %s6
  %s9 = scalar_select 0, %s8, %s6
  // Predicated region
  $region2: #{sage_model_forward.5} parent=0 // pred_check
    _
  $region3: #{sage_model_forward.5} parent=0 // pred_check_branch
    %11 = sbr.rel (0) target = $region5
  $region4: #{sage_model_forward.5} parent=0 // pred_region
    _
  $region5: #{sage_model_forward.5} parent=0 // pred_fallthru
    _
  // Predicated region
  $region6: #{sage_model_forward.5} parent=0 // pred_check
    _
  $region7: #{sage_model_forward.5} parent=0 // pred_check_branch
    %13 = sbr.rel (0) target = $region9
  $region8: #{sage_model_forward.5} parent=0 // pred_region
    _
  $region9: #{sage_model_forward.5} parent=0 // pred_fallthru
    _
  // Predicated region
  $region10: #{sage_model_forward.5} parent=0 // pred_check
    _
  $region11: #{sage_model_forward.5} parent=0 // pred_check_branch
    %15 = sbr.rel (0) target = $region13
  $region12: #{sage_model_forward.5} parent=0 // pred_region
    _
  $region13: #{sage_model_forward.5} parent=0 // pred_fallthru
    _
  // Predicated region
  $region14: #{sage_model_forward.5} parent=0 // pred_check
    _
  $region15: #{sage_model_forward.5} parent=0 // pred_check_branch
    %17 = sbr.rel (0) target = $region17
  $region16: #{sage_model_forward.5} parent=0 // pred_region
    _
  $region17: #{sage_model_forward.5} parent=0 // pred_fallthru
    _
  // Predicated region
  $region18: #{sage_model_forward.5} parent=0 // pred_check
    _
  $region19: #{sage_model_forward.5} parent=0 // pred_check_branch
    %19 = sbr.rel (0) target = $region21
  $region20: #{sage_model_forward.5} parent=0 // pred_region
    _
  $region21: #{sage_model_forward.5} parent=0 // pred_fallthru
    _
  %v20 = vld [vmem:[%s0] sm:$0xf]
  %v21 = vld [vmem:[%s0 + $0x4] sm:$0xf]
  %v22 = vld [vmem:[%s0 + $0x8] sm:$0xf]
  %v23 = vld [vmem:[%s0 + $0xc] sm:$0xf]
  %v24 = vld [vmem:[%s0 + $0x10] sm:$0xf]
  %v25 = vld [vmem:[%s0 + $0x14] sm:$0xf]
  %v26 = vld [vmem:[%s0 + $0x18] sm:$0xf]
  %v27 = vld [vmem:[%s0 + $0x1c] sm:$0xf]
  %v28 = vld [vmem:[%s0 + $0x20] sm:$0xf]
  %v29 = vld [vmem:[%s0 + $0x24] sm:$0xf]
  %v30 = vld [vmem:[%s0 + $0x28] sm:$0xf]
  %v31 = vld [vmem:[%s0 + $0x2c] sm:$0xf]
  %v32 = vld [vmem:[%s0 + $0x30] sm:$0xf]
  %v33 = vld [vmem:[%s0 + $0x34] sm:$0xf]
  %v34 = vld [vmem:[%s0 + $0x38] sm:$0xf]
  %v35 = vld [vmem:[%s0 + $0x3c] sm:$0xf]
  %v36 = vld [vmem:[%s1] sm:$0xf]
  %v37 = vld [vmem:[%s1 + $0x4] sm:$0xf]
  %v38 = vld [vmem:[%s1 + $0x8] sm:$0xf]
  %v39 = vld [vmem:[%s1 + $0xc] sm:$0xf]
  %v40 = vld [vmem:[%s1 + $0x10] sm:$0xf]
  %v41 = vld [vmem:[%s1 + $0x14] sm:$0xf]
  %v42 = vld [vmem:[%s1 + $0x18] sm:$0xf]
  %v43 = vld [vmem:[%s1 + $0x1c] sm:$0xf]
  %v44 = vld [vmem:[%s1 + $0x20] sm:$0xf]
  %v45 = vld [vmem:[%s1 + $0x24] sm:$0xf]
  %v46 = vld [vmem:[%s1 + $0x28] sm:$0xf]
  %v47 = vld [vmem:[%s1 + $0x2c] sm:$0xf]
  %v48 = vld [vmem:[%s1 + $0x30] sm:$0xf]
  %v49 = vld [vmem:[%s1 + $0x34] sm:$0xf]
  %v50 = vld [vmem:[%s1 + $0x38] sm:$0xf]
  %v51 = vld [vmem:[%s1 + $0x3c] sm:$0xf]
  %v52 = vld [vmem:[%s2] sm:$0x1]
  %v54 = vperm.slane %v52, 0
  %v72 = vunpack.c.l.b16 %v20
  %v73 = vunpack.c.l.b16 %v21
  %v74 = vunpack.c.l.b16 %v22
  %v75 = vunpack.c.l.b16 %v23
  %v76 = vunpack.c.l.b16 %v24
  %v77 = vunpack.c.l.b16 %v25
  %v78 = vunpack.c.l.b16 %v26
  %v79 = vunpack.c.l.b16 %v27
  %v80 = vunpack.c.l.b16 %v28
  %v81 = vunpack.c.l.b16 %v29
  %v82 = vunpack.c.l.b16 %v30
  %v83 = vunpack.c.l.b16 %v31
  %v84 = vunpack.c.l.b16 %v32
  %v85 = vunpack.c.l.b16 %v33
  %v86 = vunpack.c.l.b16 %v34
  %v87 = vunpack.c.l.b16 %v35
  %v88 = vpack.c.b16 %v73, %v72
  %v89 = vpack.c.b16 %v75, %v74
  %v90 = vpack.c.b16 %v77, %v76
  %v91 = vpack.c.b16 %v79, %v78
  %v92 = vpack.c.b16 %v81, %v80
  %v93 = vpack.c.b16 %v83, %v82
  %v94 = vpack.c.b16 %v85, %v84
  %v95 = vpack.c.b16 %v87, %v86
  %v120 = vunpack.c.l.b16 %v36
  %v121 = vunpack.c.l.b16 %v37
  %v122 = vunpack.c.l.b16 %v38
  %v123 = vunpack.c.l.b16 %v39
  %v124 = vunpack.c.l.b16 %v40
  %v125 = vunpack.c.l.b16 %v41
  %v126 = vunpack.c.l.b16 %v42
  %v127 = vunpack.c.l.b16 %v43
  %v128 = vunpack.c.l.b16 %v44
  %v129 = vunpack.c.l.b16 %v45
  %v130 = vunpack.c.l.b16 %v46
  %v131 = vunpack.c.l.b16 %v47
  %v132 = vunpack.c.l.b16 %v48
  %v133 = vunpack.c.l.b16 %v49
  %v134 = vunpack.c.l.b16 %v50
  %v135 = vunpack.c.l.b16 %v51
  %v136 = vpack.c.b16 %v121, %v120
  %v137 = vpack.c.b16 %v123, %v122
  %v138 = vpack.c.b16 %v125, %v124
  %v139 = vpack.c.b16 %v127, %v126
  %v140 = vpack.c.b16 %v129, %v128
  %v141 = vpack.c.b16 %v131, %v130
  %v142 = vpack.c.b16 %v133, %v132
  %v143 = vpack.c.b16 %v135, %v134
  %152 = vmatpush.bf16.msra.mxu0 %v143
  %153 = vmatpush.bf16.msra.mxu0 %v142
  %154 = vmatpush.bf16.msra.mxu0 %v141
  %155 = vmatpush.bf16.msra.mxu0 %v140
  %156 = vmatpush.bf16.msra.mxu0 %v139
  %157 = vmatpush.bf16.msra.mxu0 %v138
  %158 = vmatpush.bf16.msra.mxu0 %v137
  %159 = vmatpush.bf16.msra.mxu0 %v136
  %160 = vmatmul.bf16.gmra.mxu0 %v88
  %v161 = vpop.f32.mrf.mxu0
  %v162 = vadd.f32 %v54, %v161
  %v163 = vpop.f32.mrf.mxu0
  %v164 = vadd.f32 %v54, %v163
  %165 = vmatmul.bf16.gmra.mxu0 %v89
  %v166 = vpop.f32.mrf.mxu0
  %v167 = vadd.f32 %v54, %v166
  %v168 = vpop.f32.mrf.mxu0
  %v169 = vadd.f32 %v54, %v168
  %170 = vmatmul.bf16.gmra.mxu0 %v90
  %v171 = vpop.f32.mrf.mxu0
  %v172 = vadd.f32 %v54, %v171
  %v173 = vpop.f32.mrf.mxu0
  %v174 = vadd.f32 %v54, %v173
  %175 = vmatmul.bf16.gmra.mxu0 %v91
  %v176 = vpop.f32.mrf.mxu0
  %v177 = vadd.f32 %v54, %v176
  %v178 = vpop.f32.mrf.mxu0
  %v179 = vadd.f32 %v54, %v178
  %180 = vmatmul.bf16.gmra.mxu0 %v92
  %v181 = vpop.f32.mrf.mxu0
  %v182 = vadd.f32 %v54, %v181
  %v183 = vpop.f32.mrf.mxu0
  %v184 = vadd.f32 %v54, %v183
  %185 = vmatmul.bf16.gmra.mxu0 %v93
  %v186 = vpop.f32.mrf.mxu0
  %v187 = vadd.f32 %v54, %v186
  %v188 = vpop.f32.mrf.mxu0
  %v189 = vadd.f32 %v54, %v188
  %190 = vmatmul.bf16.gmra.mxu0 %v94
  %v191 = vpop.f32.mrf.mxu0
  %v192 = vadd.f32 %v54, %v191
  %v193 = vpop.f32.mrf.mxu0
  %v194 = vadd.f32 %v54, %v193
  %195 = vmatmul.bf16.gmra.mxu0 %v95
  %v196 = vpop.f32.mrf.mxu0
  %v197 = vadd.f32 %v54, %v196
  %v198 = vpop.f32.mrf.mxu0
  %v199 = vadd.f32 %v54, %v198
  %200 = vdwg.mxu0
  %v201 = vmax.f32 %v162, 0.0
  %v202 = vmax.f32 %v164, 0.0
  %v203 = vmax.f32 %v167, 0.0
  %v204 = vmax.f32 %v169, 0.0
  %v205 = vmax.f32 %v172, 0.0
  %v206 = vmax.f32 %v174, 0.0
  %v207 = vmax.f32 %v177, 0.0
  %v208 = vmax.f32 %v179, 0.0
  %v209 = vmax.f32 %v182, 0.0
  %v210 = vmax.f32 %v184, 0.0
  %v211 = vmax.f32 %v187, 0.0
  %v212 = vmax.f32 %v189, 0.0
  %v213 = vmax.f32 %v192, 0.0
  %v214 = vmax.f32 %v194, 0.0
  %v215 = vmax.f32 %v197, 0.0
  %v216 = vmax.f32 %v199, 0.0
  %v217 = vpack.c.bf16 %v202, %v201
  %v218 = vpack.c.bf16 %v204, %v203
  %v219 = vpack.c.bf16 %v206, %v205
  %v220 = vpack.c.bf16 %v208, %v207
  %v221 = vpack.c.bf16 %v210, %v209
  %v222 = vpack.c.bf16 %v212, %v211
  %v223 = vpack.c.bf16 %v214, %v213
  %v224 = vpack.c.bf16 %v216, %v215
  %v225 = vld [vmem:[%s3] sm:$0xf]
  %v226 = vld [vmem:[%s3 + $0x4] sm:$0xf]
  %v227 = vld [vmem:[%s3 + $0x8] sm:$0xf]
  %v228 = vld [vmem:[%s3 + $0xc] sm:$0xf]
  %v229 = vld [vmem:[%s3 + $0x10] sm:$0xf]
  %v230 = vld [vmem:[%s3 + $0x14] sm:$0xf]
  %v231 = vld [vmem:[%s3 + $0x18] sm:$0xf]
  %v232 = vld [vmem:[%s3 + $0x1c] sm:$0xf]
  %v233 = vld [vmem:[%s3 + $0x20] sm:$0xf]
  %v234 = vld [vmem:[%s3 + $0x24] sm:$0xf]
  %v235 = vld [vmem:[%s3 + $0x28] sm:$0xf]
  %v236 = vld [vmem:[%s3 + $0x2c] sm:$0xf]
  %v237 = vld [vmem:[%s3 + $0x30] sm:$0xf]
  %v238 = vld [vmem:[%s3 + $0x34] sm:$0xf]
  %v239 = vld [vmem:[%s3 + $0x38] sm:$0xf]
  %v240 = vld [vmem:[%s3 + $0x3c] sm:$0xf]
  %v241 = vld [vmem:[%s4] sm:$0x1]
  %v243 = vperm.slane %v241, 0
  %v261 = vunpack.c.l.b16 %v225
  %v262 = vunpack.c.l.b16 %v226
  %v263 = vunpack.c.l.b16 %v227
  %v264 = vunpack.c.l.b16 %v228
  %v265 = vunpack.c.l.b16 %v229
  %v266 = vunpack.c.l.b16 %v230
  %v267 = vunpack.c.l.b16 %v231
  %v268 = vunpack.c.l.b16 %v232
  %v269 = vunpack.c.l.b16 %v233
  %v270 = vunpack.c.l.b16 %v234
  %v271 = vunpack.c.l.b16 %v235
  %v272 = vunpack.c.l.b16 %v236
  %v273 = vunpack.c.l.b16 %v237
  %v274 = vunpack.c.l.b16 %v238
  %v275 = vunpack.c.l.b16 %v239
  %v276 = vunpack.c.l.b16 %v240
  %v277 = vpack.c.b16 %v262, %v261
  %v278 = vpack.c.b16 %v264, %v263
  %v279 = vpack.c.b16 %v266, %v265
  %v280 = vpack.c.b16 %v268, %v267
  %v281 = vpack.c.b16 %v270, %v269
  %v282 = vpack.c.b16 %v272, %v271
  %v283 = vpack.c.b16 %v274, %v273
  %v284 = vpack.c.b16 %v276, %v275
  %293 = vmatpush.bf16.msra.mxu0 %v284
  %294 = vmatpush.bf16.msra.mxu0 %v283
  %295 = vmatpush.bf16.msra.mxu0 %v282
  %296 = vmatpush.bf16.msra.mxu0 %v281
  %297 = vmatpush.bf16.msra.mxu0 %v280
  %298 = vmatpush.bf16.msra.mxu0 %v279
  %299 = vmatpush.bf16.msra.mxu0 %v278
  %300 = vmatpush.bf16.msra.mxu0 %v277
  %301 = vmatmul.bf16.gmra.mxu0 %v217
  %v302 = vpop.f32.mrf.mxu0
  %v303 = vadd.f32 %v243, %v302
  %v304 = vpop.f32.mrf.mxu0
  %v305 = vadd.f32 %v243, %v304
  %306 = vmatmul.bf16.gmra.mxu0 %v218
  %v307 = vpop.f32.mrf.mxu0
  %v308 = vadd.f32 %v243, %v307
  %v309 = vpop.f32.mrf.mxu0
  %v310 = vadd.f32 %v243, %v309
  %311 = vmatmul.bf16.gmra.mxu0 %v219
  %v312 = vpop.f32.mrf.mxu0
  %v313 = vadd.f32 %v243, %v312
  %v314 = vpop.f32.mrf.mxu0
  %v315 = vadd.f32 %v243, %v314
  %316 = vmatmul.bf16.gmra.mxu0 %v220
  %v317 = vpop.f32.mrf.mxu0
  %v318 = vadd.f32 %v243, %v317
  %v319 = vpop.f32.mrf.mxu0
  %v320 = vadd.f32 %v243, %v319
  %321 = vmatmul.bf16.gmra.mxu0 %v221
  %v322 = vpop.f32.mrf.mxu0
  %v323 = vadd.f32 %v243, %v322
  %v324 = vpop.f32.mrf.mxu0
  %v325 = vadd.f32 %v243, %v324
  %326 = vmatmul.bf16.gmra.mxu0 %v222
  %v327 = vpop.f32.mrf.mxu0
  %v328 = vadd.f32 %v243, %v327
  %v329 = vpop.f32.mrf.mxu0
  %v330 = vadd.f32 %v243, %v329
  %331 = vmatmul.bf16.gmra.mxu0 %v223
  %v332 = vpop.f32.mrf.mxu0
  %v333 = vadd.f32 %v243, %v332
  %v334 = vpop.f32.mrf.mxu0
  %v335 = vadd.f32 %v243, %v334
  %336 = vmatmul.bf16.gmra.mxu0 %v224
  %v337 = vpop.f32.mrf.mxu0
  %v338 = vadd.f32 %v243, %v337
  %v339 = vpop.f32.mrf.mxu0
  %v340 = vadd.f32 %v243, %v339
  %341 = vdwg.mxu0
  %v342 = vpack.c.bf16 %v303, %v303
  %v343 = vpack.c.bf16 %v305, %v305
  %v344 = vpack.c.bf16 %v308, %v308
  %v345 = vpack.c.bf16 %v310, %v310
  %v346 = vpack.c.bf16 %v313, %v313
  %v347 = vpack.c.bf16 %v315, %v315
  %v348 = vpack.c.bf16 %v318, %v318
  %v349 = vpack.c.bf16 %v320, %v320
  %v350 = vpack.c.bf16 %v323, %v323
  %v351 = vpack.c.bf16 %v325, %v325
  %v352 = vpack.c.bf16 %v328, %v328
  %v353 = vpack.c.bf16 %v330, %v330
  %v354 = vpack.c.bf16 %v333, %v333
  %v355 = vpack.c.bf16 %v335, %v335
  %v356 = vpack.c.bf16 %v338, %v338
  %v357 = vpack.c.bf16 %v340, %v340
  %358 = vst [vmem:[%s5] sm:$0xf] %v342
  %359 = vst [vmem:[%s5 + $0x4] sm:$0xf] %v343
  %360 = vst [vmem:[%s5 + $0x8] sm:$0xf] %v344
  %361 = vst [vmem:[%s5 + $0xc] sm:$0xf] %v345
  %362 = vst [vmem:[%s5 + $0x10] sm:$0xf] %v346
  %363 = vst [vmem:[%s5 + $0x14] sm:$0xf] %v347
  %364 = vst [vmem:[%s5 + $0x18] sm:$0xf] %v348
  %365 = vst [vmem:[%s5 + $0x1c] sm:$0xf] %v349
  %366 = vst [vmem:[%s5 + $0x20] sm:$0xf] %v350
  %367 = vst [vmem:[%s5 + $0x24] sm:$0xf] %v351
  %368 = vst [vmem:[%s5 + $0x28] sm:$0xf] %v352
  %369 = vst [vmem:[%s5 + $0x2c] sm:$0xf] %v353
  %370 = vst [vmem:[%s5 + $0x30] sm:$0xf] %v354
  %371 = vst [vmem:[%s5 + $0x34] sm:$0xf] %v355
  %372 = vst [vmem:[%s5 + $0x38] sm:$0xf] %v356
  %373 = vst [vmem:[%s5 + $0x3c] sm:$0xf] %v357
  // Predicated region
  $region22: #{sage_model_forward.5} parent=0 // pred_check
    _
  $region23: #{sage_model_forward.5} parent=0 // pred_check_branch
    %375 = sbr.rel (0) target = $region25
  $region24: #{sage_model_forward.5} parent=0 // pred_region
    _
  $region25: #{sage_model_forward.5} parent=0 // pred_fallthru
    _
  // Predicated region
  $region26: #{sage_model_forward.5} parent=0 // pred_check
    _
  $region27: #{sage_model_forward.5} parent=0 // pred_check_branch
    %377 = sbr.rel (0) target = $region29
  $region28: #{sage_model_forward.5} parent=0 // pred_region
    _
  $region29: #{sage_model_forward.5} parent=0 // pred_fallthru
    _

// kernel: sage_model_forward.7
$region0: #{sage_model_forward.7}
  #allocation0 [shape = 'u32[]', space=smem, size = 0x4, offset = 0x4, fixed_abs, tag = 'smem constant byte address 0x4 - core index']
  #allocation1 [shape = 'u32[72,128]{1,0:T(1,128)}', space=vmem, size = 0x9000, scoped, tag = 'internal scratch']
  #allocation2 [shape = 'f32[128,128]{1,0:T(8,128)}', space=vmem, size = 0x10000, scoped, tag = 'scratch operand']
  %s0 = inlined_call_operand.vmem [shape: s8[128,128], index: 0, kind: input, shape index: {}]
  %s1 = inlined_call_operand.vmem [shape: bf16[128,128], index: 1, kind: input, shape index: {}, may-alias: {1,2}]
  %s2 = inlined_call_operand.vmem [shape: bf16[128,128], index: 2, kind: input, shape index: {}, may-alias: {1,2}]
  %s3 = inlined_call_operand.vmem [shape: f32[128,1], index: 3, kind: input, shape index: {}]
  %s4 = inlined_call_operand.vmem [shape: bf16[128,128], index: 4, kind: input, shape index: {}]
  %s5 = inlined_call_operand.vmem [shape: bf16[128,128], index: 5, kind: input, shape index: {}]
  %s6 = inlined_call_operand.vmem [shape: f32[1,128], index: 6, kind: input, shape index: {}]
  %s7 = inlined_call_operand.vmem [shape: bf16[128,128], index: 7, kind: output, shape index: {}]
  %s8 = sld [smem:[#allocation0]]
  $region46: #{sage_model_forward.7} parent=0
    _
  %s10 = ssub.s32 1, %s8
  %s11 = scalar_select 0, %s10, %s8
  // Predicated region
  $region2: #{sage_model_forward.7} parent=0 // pred_check
    _
  $region3: #{sage_model_forward.7} parent=0 // pred_check_branch
    %13 = sbr.rel (0) target = $region5
  $region4: #{sage_model_forward.7} parent=0 // pred_region
    _
  $region5: #{sage_model_forward.7} parent=0 // pred_fallthru
    _
  // Predicated region
  $region6: #{sage_model_forward.7} parent=0 // pred_check
    _
  $region7: #{sage_model_forward.7} parent=0 // pred_check_branch
    %15 = sbr.rel (0) target = $region9
  $region8: #{sage_model_forward.7} parent=0 // pred_region
    _
  $region9: #{sage_model_forward.7} parent=0 // pred_fallthru
    _
  // Predicated region
  $region10: #{sage_model_forward.7} parent=0 // pred_check
    _
  $region11: #{sage_model_forward.7} parent=0 // pred_check_branch
    %17 = sbr.rel (0) target = $region13
  $region12: #{sage_model_forward.7} parent=0 // pred_region
    _
  $region13: #{sage_model_forward.7} parent=0 // pred_fallthru
    _
  // Predicated region
  $region14: #{sage_model_forward.7} parent=0 // pred_check
    _
  $region15: #{sage_model_forward.7} parent=0 // pred_check_branch
    %19 = sbr.rel (0) target = $region17
  $region16: #{sage_model_forward.7} parent=0 // pred_region
    _
  $region17: #{sage_model_forward.7} parent=0 // pred_fallthru
    _
  // Predicated region
  $region18: #{sage_model_forward.7} parent=0 // pred_check
    _
  $region19: #{sage_model_forward.7} parent=0 // pred_check_branch
    %21 = sbr.rel (0) target = $region21
  $region20: #{sage_model_forward.7} parent=0 // pred_region
    _
  $region21: #{sage_model_forward.7} parent=0 // pred_fallthru
    _
  // Predicated region
  $region22: #{sage_model_forward.7} parent=0 // pred_check
    _
  $region23: #{sage_model_forward.7} parent=0 // pred_check_branch
    %23 = sbr.rel (0) target = $region25
  $region24: #{sage_model_forward.7} parent=0 // pred_region
    _
  $region25: #{sage_model_forward.7} parent=0 // pred_fallthru
    _
  // Predicated region
  $region26: #{sage_model_forward.7} parent=0 // pred_check
    _
  $region27: #{sage_model_forward.7} parent=0 // pred_check_branch
    %25 = sbr.rel (0) target = $region29
  $region28: #{sage_model_forward.7} parent=0 // pred_region
    _
  $region29: #{sage_model_forward.7} parent=0 // pred_fallthru
    _
  %p26 = scmp.eq.s32.totalorder 0, 0
  // Predicated region
  $region30: #{sage_model_forward.7} parent=0 // pred_check
    %p27 = pneg %p26
  $region31: #{sage_model_forward.7} parent=0 // pred_check_branch
    %29 = sbr.rel (%p27) target = $region33
  $region32: #{sage_model_forward.7} parent=0 // pred_region
    %30 = vst [vmem:[#allocation2] sm:$0xff] 0.0
    %31 = vst [vmem:[#allocation2 + $0x8] sm:$0xff] 0.0
    %32 = vst [vmem:[#allocation2 + $0x10] sm:$0xff] 0.0
    %33 = vst [vmem:[#allocation2 + $0x18] sm:$0xff] 0.0
    %34 = vst [vmem:[#allocation2 + $0x20] sm:$0xff] 0.0
    %35 = vst [vmem:[#allocation2 + $0x28] sm:$0xff] 0.0
    %36 = vst [vmem:[#allocation2 + $0x30] sm:$0xff] 0.0
    %37 = vst [vmem:[#allocation2 + $0x38] sm:$0xff] 0.0
    %38 = vst [vmem:[#allocation2 + $0x40] sm:$0xff] 0.0
    %39 = vst [vmem:[#allocation2 + $0x48] sm:$0xff] 0.0
    %40 = vst [vmem:[#allocation2 + $0x50] sm:$0xff] 0.0
    %41 = vst [vmem:[#allocation2 + $0x58] sm:$0xff] 0.0
    %42 = vst [vmem:[#allocation2 + $0x60] sm:$0xff] 0.0
    %43 = vst [vmem:[#allocation2 + $0x68] sm:$0xff] 0.0
    %44 = vst [vmem:[#allocation2 + $0x70] sm:$0xff] 0.0
    %45 = vst [vmem:[#allocation2 + $0x78] sm:$0xff] 0.0
  $region33: #{sage_model_forward.7} parent=0 // pred_fallthru
    _
  %v46 = vld [vmem:[%s0] sm:$0x3]
  %v47 = vld [vmem:[%s0 + $0x2] sm:$0x3]
  %v48 = vld [vmem:[%s0 + $0x4] sm:$0x3]
  %v49 = vld [vmem:[%s0 + $0x6] sm:$0x3]
  %v50 = vld [vmem:[%s0 + $0x8] sm:$0x3]
  %v51 = vld [vmem:[%s0 + $0xa] sm:$0x3]
  %v52 = vld [vmem:[%s0 + $0xc] sm:$0x3]
  %v53 = vld [vmem:[%s0 + $0xe] sm:$0x3]
  %v54 = vld [vmem:[%s0 + $0x10] sm:$0x3]
  %v55 = vld [vmem:[%s0 + $0x12] sm:$0x3]
  %v56 = vld [vmem:[%s0 + $0x14] sm:$0x3]
  %v57 = vld [vmem:[%s0 + $0x16] sm:$0x3]
  %v58 = vld [vmem:[%s0 + $0x18] sm:$0x3]
  %v59 = vld [vmem:[%s0 + $0x1a] sm:$0x3]
  %v60 = vld [vmem:[%s0 + $0x1c] sm:$0x3]
  %v61 = vld [vmem:[%s0 + $0x1e] sm:$0x3]
  %v62 = vunpack.c.0.s8 %v46
  %v63 = vunpack.c.0.s8 %v47
  %v64 = vunpack.c.0.s8 %v48
  %v65 = vunpack.c.0.s8 %v49
  %v66 = vunpack.c.0.s8 %v50
  %v67 = vunpack.c.0.s8 %v51
  %v68 = vunpack.c.0.s8 %v52
  %v69 = vunpack.c.0.s8 %v53
  %v70 = vunpack.c.0.s8 %v54
  %v71 = vunpack.c.0.s8 %v55
  %v72 = vunpack.c.0.s8 %v56
  %v73 = vunpack.c.0.s8 %v57
  %v74 = vunpack.c.0.s8 %v58
  %v75 = vunpack.c.0.s8 %v59
  %v76 = vunpack.c.0.s8 %v60
  %v77 = vunpack.c.0.s8 %v61
  %v78 = vcvt.s32.f32 %v62
  %v79 = vcvt.s32.f32 %v63
  %v80 = vcvt.s32.f32 %v64
  %v81 = vcvt.s32.f32 %v65
  %v82 = vcvt.s32.f32 %v66
  %v83 = vcvt.s32.f32 %v67
  %v84 = vcvt.s32.f32 %v68
  %v85 = vcvt.s32.f32 %v69
  %v86 = vcvt.s32.f32 %v70
  %v87 = vcvt.s32.f32 %v71
  %v88 = vcvt.s32.f32 %v72
  %v89 = vcvt.s32.f32 %v73
  %v90 = vcvt.s32.f32 %v74
  %v91 = vcvt.s32.f32 %v75
  %v92 = vcvt.s32.f32 %v76
  %v93 = vcvt.s32.f32 %v77
  %v94 = vpack.c.bf16 %v79, %v78
  %v95 = vpack.c.bf16 %v81, %v80
  %v96 = vpack.c.bf16 %v83, %v82
  %v97 = vpack.c.bf16 %v85, %v84
  %v98 = vpack.c.bf16 %v87, %v86
  %v99 = vpack.c.bf16 %v89, %v88
  %v100 = vpack.c.bf16 %v91, %v90
  %v101 = vpack.c.bf16 %v93, %v92
  %v102 = vld [vmem:[#allocation2] sm:$0xff]
  %v103 = vld [vmem:[#allocation2 + $0x8] sm:$0xff]
  %v104 = vld [vmem:[#allocation2 + $0x10] sm:$0xff]
  %v105 = vld [vmem:[#allocation2 + $0x18] sm:$0xff]
  %v106 = vld [vmem:[#allocation2 + $0x20] sm:$0xff]
  %v107 = vld [vmem:[#allocation2 + $0x28] sm:$0xff]
  %v108 = vld [vmem:[#allocation2 + $0x30] sm:$0xff]
  %v109 = vld [vmem:[#allocation2 + $0x38] sm:$0xff]
  %v110 = vld [vmem:[#allocation2 + $0x40] sm:$0xff]
  %v111 = vld [vmem:[#allocation2 + $0x48] sm:$0xff]
  %v112 = vld [vmem:[#allocation2 + $0x50] sm:$0xff]
  %v113 = vld [vmem:[#allocation2 + $0x58] sm:$0xff]
  %v114 = vld [vmem:[#allocation2 + $0x60] sm:$0xff]
  %v115 = vld [vmem:[#allocation2 + $0x68] sm:$0xff]
  %v116 = vld [vmem:[#allocation2 + $0x70] sm:$0xff]
  %v117 = vld [vmem:[#allocation2 + $0x78] sm:$0xff]
  %v118 = vld [vmem:[%s1] sm:$0xf]
  %v119 = vld [vmem:[%s1 + $0x4] sm:$0xf]
  %v120 = vld [vmem:[%s1 + $0x8] sm:$0xf]
  %v121 = vld [vmem:[%s1 + $0xc] sm:$0xf]
  %v122 = vld [vmem:[%s1 + $0x10] sm:$0xf]
  %v123 = vld [vmem:[%s1 + $0x14] sm:$0xf]
  %v124 = vld [vmem:[%s1 + $0x18] sm:$0xf]
  %v125 = vld [vmem:[%s1 + $0x1c] sm:$0xf]
  %v126 = vld [vmem:[%s1 + $0x20] sm:$0xf]
  %v127 = vld [vmem:[%s1 + $0x24] sm:$0xf]
  %v128 = vld [vmem:[%s1 + $0x28] sm:$0xf]
  %v129 = vld [vmem:[%s1 + $0x2c] sm:$0xf]
  %v130 = vld [vmem:[%s1 + $0x30] sm:$0xf]
  %v131 = vld [vmem:[%s1 + $0x34] sm:$0xf]
  %v132 = vld [vmem:[%s1 + $0x38] sm:$0xf]
  %v133 = vld [vmem:[%s1 + $0x3c] sm:$0xf]
  %v150 = vunpack.c.l.b16 %v118
  %v151 = vunpack.c.l.b16 %v119
  %v152 = vunpack.c.l.b16 %v120
  %v153 = vunpack.c.l.b16 %v121
  %v154 = vunpack.c.l.b16 %v122
  %v155 = vunpack.c.l.b16 %v123
  %v156 = vunpack.c.l.b16 %v124
  %v157 = vunpack.c.l.b16 %v125
  %v158 = vunpack.c.l.b16 %v126
  %v159 = vunpack.c.l.b16 %v127
  %v160 = vunpack.c.l.b16 %v128
  %v161 = vunpack.c.l.b16 %v129
  %v162 = vunpack.c.l.b16 %v130
  %v163 = vunpack.c.l.b16 %v131
  %v164 = vunpack.c.l.b16 %v132
  %v165 = vunpack.c.l.b16 %v133
  %v166 = vpack.c.b16 %v151, %v150
  %v167 = vpack.c.b16 %v153, %v152
  %v168 = vpack.c.b16 %v155, %v154
  %v169 = vpack.c.b16 %v157, %v156
  %v170 = vpack.c.b16 %v159, %v158
  %v171 = vpack.c.b16 %v161, %v160
  %v172 = vpack.c.b16 %v163, %v162
  %v173 = vpack.c.b16 %v165, %v164
  %182 = vmatpush.bf16.msra.mxu0 %v173
  %183 = vmatpush.bf16.msra.mxu0 %v172
  %184 = vmatpush.bf16.msra.mxu0 %v171
  %185 = vmatpush.bf16.msra.mxu0 %v170
  %186 = vmatpush.bf16.msra.mxu0 %v169
  %187 = vmatpush.bf16.msra.mxu0 %v168
  %188 = vmatpush.bf16.msra.mxu0 %v167
  %189 = vmatpush.bf16.msra.mxu0 %v166
  %190 = vmatmul.bf16.gmra.mxu0 %v94
  %v191 = vpop.f32.mrf.mxu0
  %v192 = vadd.f32 0.0, %v191
  %v193 = vpop.f32.mrf.mxu0
  %v194 = vadd.f32 0.0, %v193
  %195 = vmatmul.bf16.gmra.mxu0 %v95
  %v196 = vpop.f32.mrf.mxu0
  %v197 = vadd.f32 0.0, %v196
  %v198 = vpop.f32.mrf.mxu0
  %v199 = vadd.f32 0.0, %v198
  %200 = vmatmul.bf16.gmra.mxu0 %v96
  %v201 = vpop.f32.mrf.mxu0
  %v202 = vadd.f32 0.0, %v201
  %v203 = vpop.f32.mrf.mxu0
  %v204 = vadd.f32 0.0, %v203
  %205 = vmatmul.bf16.gmra.mxu0 %v97
  %v206 = vpop.f32.mrf.mxu0
  %v207 = vadd.f32 0.0, %v206
  %v208 = vpop.f32.mrf.mxu0
  %v209 = vadd.f32 0.0, %v208
  %210 = vmatmul.bf16.gmra.mxu0 %v98
  %v211 = vpop.f32.mrf.mxu0
  %v212 = vadd.f32 0.0, %v211
  %v213 = vpop.f32.mrf.mxu0
  %v214 = vadd.f32 0.0, %v213
  %215 = vmatmul.bf16.gmra.mxu0 %v99
  %v216 = vpop.f32.mrf.mxu0
  %v217 = vadd.f32 0.0, %v216
  %v218 = vpop.f32.mrf.mxu0
  %v219 = vadd.f32 0.0, %v218
  %220 = vmatmul.bf16.gmra.mxu0 %v100
  %v221 = vpop.f32.mrf.mxu0
  %v222 = vadd.f32 0.0, %v221
  %v223 = vpop.f32.mrf.mxu0
  %v224 = vadd.f32 0.0, %v223
  %225 = vmatmul.bf16.gmra.mxu0 %v101
  %v226 = vpop.f32.mrf.mxu0
  %v227 = vadd.f32 0.0, %v226
  %v228 = vpop.f32.mrf.mxu0
  %v229 = vadd.f32 0.0, %v228
  %230 = vdwg.mxu0
  %v231 = vadd.f32 %v102, %v192
  %v232 = vadd.f32 %v103, %v194
  %v233 = vadd.f32 %v104, %v197
  %v234 = vadd.f32 %v105, %v199
  %v235 = vadd.f32 %v106, %v202
  %v236 = vadd.f32 %v107, %v204
  %v237 = vadd.f32 %v108, %v207
  %v238 = vadd.f32 %v109, %v209
  %v239 = vadd.f32 %v110, %v212
  %v240 = vadd.f32 %v111, %v214
  %v241 = vadd.f32 %v112, %v217
  %v242 = vadd.f32 %v113, %v219
  %v243 = vadd.f32 %v114, %v222
  %v244 = vadd.f32 %v115, %v224
  %v245 = vadd.f32 %v116, %v227
  %v246 = vadd.f32 %v117, %v229
  %247 = vst [vmem:[#allocation2] sm:$0xff] %v231
  %248 = vst [vmem:[#allocation2 + $0x8] sm:$0xff] %v232
  %249 = vst [vmem:[#allocation2 + $0x10] sm:$0xff] %v233
  %250 = vst [vmem:[#allocation2 + $0x18] sm:$0xff] %v234
  %251 = vst [vmem:[#allocation2 + $0x20] sm:$0xff] %v235
  %252 = vst [vmem:[#allocation2 + $0x28] sm:$0xff] %v236
  %253 = vst [vmem:[#allocation2 + $0x30] sm:$0xff] %v237
  %254 = vst [vmem:[#allocation2 + $0x38] sm:$0xff] %v238
  %255 = vst [vmem:[#allocation2 + $0x40] sm:$0xff] %v239
  %256 = vst [vmem:[#allocation2 + $0x48] sm:$0xff] %v240
  %257 = vst [vmem:[#allocation2 + $0x50] sm:$0xff] %v241
  %258 = vst [vmem:[#allocation2 + $0x58] sm:$0xff] %v242
  %259 = vst [vmem:[#allocation2 + $0x60] sm:$0xff] %v243
  %260 = vst [vmem:[#allocation2 + $0x68] sm:$0xff] %v244
  %261 = vst [vmem:[#allocation2 + $0x70] sm:$0xff] %v245
  %262 = vst [vmem:[#allocation2 + $0x78] sm:$0xff] %v246
  // Predicated region
  $region34: #{sage_model_forward.7} parent=0 // pred_check
    %p263 = pneg %p26
  $region35: #{sage_model_forward.7} parent=0 // pred_check_branch
    %265 = sbr.rel (%p263) target = $region37
  $region36: #{sage_model_forward.7} parent=0 // pred_region
    %v266 = vld [vmem:[#allocation2] sm:$0xff]
    %v267 = vld [vmem:[#allocation2 + $0x8] sm:$0xff]
    %v268 = vld [vmem:[#allocation2 + $0x10] sm:$0xff]
    %v269 = vld [vmem:[#allocation2 + $0x18] sm:$0xff]
    %v270 = vld [vmem:[#allocation2 + $0x20] sm:$0xff]
    %v271 = vld [vmem:[#allocation2 + $0x28] sm:$0xff]
    %v272 = vld [vmem:[#allocation2 + $0x30] sm:$0xff]
    %v273 = vld [vmem:[#allocation2 + $0x38] sm:$0xff]
    %v274 = vld [vmem:[#allocation2 + $0x40] sm:$0xff]
    %v275 = vld [vmem:[#allocation2 + $0x48] sm:$0xff]
    %v276 = vld [vmem:[#allocation2 + $0x50] sm:$0xff]
    %v277 = vld [vmem:[#allocation2 + $0x58] sm:$0xff]
    %v278 = vld [vmem:[#allocation2 + $0x60] sm:$0xff]
    %v279 = vld [vmem:[#allocation2 + $0x68] sm:$0xff]
    %v280 = vld [vmem:[#allocation2 + $0x70] sm:$0xff]
    %v281 = vld [vmem:[#allocation2 + $0x78] sm:$0xff]
    %v282 = vld [vmem:[%s3] sm:$0xff]
    %v283 = vld [vmem:[%s3 + $0x8] sm:$0xff]
    %v284 = vld [vmem:[%s3 + $0x10] sm:$0xff]
    %v285 = vld [vmem:[%s3 + $0x18] sm:$0xff]
    %v286 = vld [vmem:[%s3 + $0x20] sm:$0xff]
    %v287 = vld [vmem:[%s3 + $0x28] sm:$0xff]
    %v288 = vld [vmem:[%s3 + $0x30] sm:$0xff]
    %v289 = vld [vmem:[%s3 + $0x38] sm:$0xff]
    %v290 = vld [vmem:[%s3 + $0x40] sm:$0xff]
    %v291 = vld [vmem:[%s3 + $0x48] sm:$0xff]
    %v292 = vld [vmem:[%s3 + $0x50] sm:$0xff]
    %v293 = vld [vmem:[%s3 + $0x58] sm:$0xff]
    %v294 = vld [vmem:[%s3 + $0x60] sm:$0xff]
    %v295 = vld [vmem:[%s3 + $0x68] sm:$0xff]
    %v296 = vld [vmem:[%s3 + $0x70] sm:$0xff]
    %v297 = vld [vmem:[%s3 + $0x78] sm:$0xff]
    %299 = vset.pattern.permute.xlu0 0
    %300 = vperm.xlu0 %299, %v282
    %v301 = vpop.permute.xlu0 %300
    %304 = vset.pattern.permute.xlu0 0
    %305 = vperm.xlu0 %304, %v283
    %v306 = vpop.permute.xlu0 %305
    %309 = vset.pattern.permute.xlu0 0
    %310 = vperm.xlu0 %309, %v284
    %v311 = vpop.permute.xlu0 %310
    %314 = vset.pattern.permute.xlu0 0
    %315 = vperm.xlu0 %314, %v285
    %v316 = vpop.permute.xlu0 %315
    %319 = vset.pattern.permute.xlu0 0
    %320 = vperm.xlu0 %319, %v286
    %v321 = vpop.permute.xlu0 %320
    %324 = vset.pattern.permute.xlu0 0
    %325 = vperm.xlu0 %324, %v287
    %v326 = vpop.permute.xlu0 %325
    %329 = vset.pattern.permute.xlu0 0
    %330 = vperm.xlu0 %329, %v288
    %v331 = vpop.permute.xlu0 %330
    %334 = vset.pattern.permute.xlu0 0
    %335 = vperm.xlu0 %334, %v289
    %v336 = vpop.permute.xlu0 %335
    %339 = vset.pattern.permute.xlu0 0
    %340 = vperm.xlu0 %339, %v290
    %v341 = vpop.permute.xlu0 %340
    %344 = vset.pattern.permute.xlu0 0
    %345 = vperm.xlu0 %344, %v291
    %v346 = vpop.permute.xlu0 %345
    %349 = vset.pattern.permute.xlu0 0
    %350 = vperm.xlu0 %349, %v292
    %v351 = vpop.permute.xlu0 %350
    %354 = vset.pattern.permute.xlu0 0
    %355 = vperm.xlu0 %354, %v293
    %v356 = vpop.permute.xlu0 %355
    %359 = vset.pattern.permute.xlu0 0
    %360 = vperm.xlu0 %359, %v294
    %v361 = vpop.permute.xlu0 %360
    %364 = vset.pattern.permute.xlu0 0
    %365 = vperm.xlu0 %364, %v295
    %v366 = vpop.permute.xlu0 %365
    %369 = vset.pattern.permute.xlu0 0
    %370 = vperm.xlu0 %369, %v296
    %v371 = vpop.permute.xlu0 %370
    %374 = vset.pattern.permute.xlu0 0
    %375 = vperm.xlu0 %374, %v297
    %v376 = vpop.permute.xlu0 %375
    %v378 = vmul.f32 %v266, %v301
    %v379 = vmul.f32 %v267, %v306
    %v380 = vmul.f32 %v268, %v311
    %v381 = vmul.f32 %v269, %v316
    %v382 = vmul.f32 %v270, %v321
    %v383 = vmul.f32 %v271, %v326
    %v384 = vmul.f32 %v272, %v331
    %v385 = vmul.f32 %v273, %v336
    %v386 = vmul.f32 %v274, %v341
    %v387 = vmul.f32 %v275, %v346
    %v388 = vmul.f32 %v276, %v351
    %v389 = vmul.f32 %v277, %v356
    %v390 = vmul.f32 %v278, %v361
    %v391 = vmul.f32 %v279, %v366
    %v392 = vmul.f32 %v280, %v371
    %v393 = vmul.f32 %v281, %v376
    %v394 = vpack.c.bf16 %v379, %v378
    %v395 = vpack.c.bf16 %v381, %v380
    %v396 = vpack.c.bf16 %v383, %v382
    %v397 = vpack.c.bf16 %v385, %v384
    %v398 = vpack.c.bf16 %v387, %v386
    %v399 = vpack.c.bf16 %v389, %v388
    %v400 = vpack.c.bf16 %v391, %v390
    %v401 = vpack.c.bf16 %v393, %v392
    %v402 = vld [vmem:[%s2] sm:$0xf]
    %v403 = vld [vmem:[%s2 + $0x4] sm:$0xf]
    %v404 = vld [vmem:[%s2 + $0x8] sm:$0xf]
    %v405 = vld [vmem:[%s2 + $0xc] sm:$0xf]
    %v406 = vld [vmem:[%s2 + $0x10] sm:$0xf]
    %v407 = vld [vmem:[%s2 + $0x14] sm:$0xf]
    %v408 = vld [vmem:[%s2 + $0x18] sm:$0xf]
    %v409 = vld [vmem:[%s2 + $0x1c] sm:$0xf]
    %v410 = vld [vmem:[%s2 + $0x20] sm:$0xf]
    %v411 = vld [vmem:[%s2 + $0x24] sm:$0xf]
    %v412 = vld [vmem:[%s2 + $0x28] sm:$0xf]
    %v413 = vld [vmem:[%s2 + $0x2c] sm:$0xf]
    %v414 = vld [vmem:[%s2 + $0x30] sm:$0xf]
    %v415 = vld [vmem:[%s2 + $0x34] sm:$0xf]
    %v416 = vld [vmem:[%s2 + $0x38] sm:$0xf]
    %v417 = vld [vmem:[%s2 + $0x3c] sm:$0xf]
    %v418 = vld [vmem:[%s4] sm:$0xf]
    %v419 = vld [vmem:[%s4 + $0x4] sm:$0xf]
    %v420 = vld [vmem:[%s4 + $0x8] sm:$0xf]
    %v421 = vld [vmem:[%s4 + $0xc] sm:$0xf]
    %v422 = vld [vmem:[%s4 + $0x10] sm:$0xf]
    %v423 = vld [vmem:[%s4 + $0x14] sm:$0xf]
    %v424 = vld [vmem:[%s4 + $0x18] sm:$0xf]
    %v425 = vld [vmem:[%s4 + $0x1c] sm:$0xf]
    %v426 = vld [vmem:[%s4 + $0x20] sm:$0xf]
    %v427 = vld [vmem:[%s4 + $0x24] sm:$0xf]
    %v428 = vld [vmem:[%s4 + $0x28] sm:$0xf]
    %v429 = vld [vmem:[%s4 + $0x2c] sm:$0xf]
    %v430 = vld [vmem:[%s4 + $0x30] sm:$0xf]
    %v431 = vld [vmem:[%s4 + $0x34] sm:$0xf]
    %v432 = vld [vmem:[%s4 + $0x38] sm:$0xf]
    %v433 = vld [vmem:[%s4 + $0x3c] sm:$0xf]
    %v434 = vld [vmem:[%s5] sm:$0xf]
    %v435 = vld [vmem:[%s5 + $0x4] sm:$0xf]
    %v436 = vld [vmem:[%s5 + $0x8] sm:$0xf]
    %v437 = vld [vmem:[%s5 + $0xc] sm:$0xf]
    %v438 = vld [vmem:[%s5 + $0x10] sm:$0xf]
    %v439 = vld [vmem:[%s5 + $0x14] sm:$0xf]
    %v440 = vld [vmem:[%s5 + $0x18] sm:$0xf]
    %v441 = vld [vmem:[%s5 + $0x1c] sm:$0xf]
    %v442 = vld [vmem:[%s5 + $0x20] sm:$0xf]
    %v443 = vld [vmem:[%s5 + $0x24] sm:$0xf]
    %v444 = vld [vmem:[%s5 + $0x28] sm:$0xf]
    %v445 = vld [vmem:[%s5 + $0x2c] sm:$0xf]
    %v446 = vld [vmem:[%s5 + $0x30] sm:$0xf]
    %v447 = vld [vmem:[%s5 + $0x34] sm:$0xf]
    %v448 = vld [vmem:[%s5 + $0x38] sm:$0xf]
    %v449 = vld [vmem:[%s5 + $0x3c] sm:$0xf]
    %v466 = vunpack.c.l.b16 %v434
    %v467 = vunpack.c.l.b16 %v435
    %v468 = vunpack.c.l.b16 %v436
    %v469 = vunpack.c.l.b16 %v437
    %v470 = vunpack.c.l.b16 %v438
    %v471 = vunpack.c.l.b16 %v439
    %v472 = vunpack.c.l.b16 %v440
    %v473 = vunpack.c.l.b16 %v441
    %v474 = vunpack.c.l.b16 %v442
    %v475 = vunpack.c.l.b16 %v443
    %v476 = vunpack.c.l.b16 %v444
    %v477 = vunpack.c.l.b16 %v445
    %v478 = vunpack.c.l.b16 %v446
    %v479 = vunpack.c.l.b16 %v447
    %v480 = vunpack.c.l.b16 %v448
    %v481 = vunpack.c.l.b16 %v449
    %v482 = vpack.c.b16 %v467, %v466
    %v483 = vpack.c.b16 %v469, %v468
    %v484 = vpack.c.b16 %v471, %v470
    %v485 = vpack.c.b16 %v473, %v472
    %v486 = vpack.c.b16 %v475, %v474
    %v487 = vpack.c.b16 %v477, %v476
    %v488 = vpack.c.b16 %v479, %v478
    %v489 = vpack.c.b16 %v481, %v480
    %498 = vmatpush.bf16.msra.mxu0 %v489
    %499 = vmatpush.bf16.msra.mxu0 %v488
    %500 = vmatpush.bf16.msra.mxu0 %v487
    %501 = vmatpush.bf16.msra.mxu0 %v486
    %502 = vmatpush.bf16.msra.mxu0 %v485
    %503 = vmatpush.bf16.msra.mxu0 %v484
    %504 = vmatpush.bf16.msra.mxu0 %v483
    %505 = vmatpush.bf16.msra.mxu0 %v482
    %506 = vmatmul.bf16.gmra.mxu0 %v394
    %v507 = vpop.f32.mrf.mxu0
    %v508 = vadd.f32 0.0, %v507
    %v509 = vpop.f32.mrf.mxu0
    %v510 = vadd.f32 0.0, %v509
    %511 = vmatmul.bf16.gmra.mxu0 %v395
    %v512 = vpop.f32.mrf.mxu0
    %v513 = vadd.f32 0.0, %v512
    %v514 = vpop.f32.mrf.mxu0
    %v515 = vadd.f32 0.0, %v514
    %516 = vmatmul.bf16.gmra.mxu0 %v396
    %v517 = vpop.f32.mrf.mxu0
    %v518 = vadd.f32 0.0, %v517
    %v519 = vpop.f32.mrf.mxu0
    %v520 = vadd.f32 0.0, %v519
    %521 = vmatmul.bf16.gmra.mxu0 %v397
    %v522 = vpop.f32.mrf.mxu0
    %v523 = vadd.f32 0.0, %v522
    %v524 = vpop.f32.mrf.mxu0
    %v525 = vadd.f32 0.0, %v524
    %526 = vmatmul.bf16.gmra.mxu0 %v398
    %v527 = vpop.f32.mrf.mxu0
    %v528 = vadd.f32 0.0, %v527
    %v529 = vpop.f32.mrf.mxu0
    %v530 = vadd.f32 0.0, %v529
    %531 = vmatmul.bf16.gmra.mxu0 %v399
    %v532 = vpop.f32.mrf.mxu0
    %v533 = vadd.f32 0.0, %v532
    %v534 = vpop.f32.mrf.mxu0
    %v535 = vadd.f32 0.0, %v534
    %536 = vmatmul.bf16.gmra.mxu0 %v400
    %v537 = vpop.f32.mrf.mxu0
    %v538 = vadd.f32 0.0, %v537
    %v539 = vpop.f32.mrf.mxu0
    %v540 = vadd.f32 0.0, %v539
    %541 = vmatmul.bf16.gmra.mxu0 %v401
    %v542 = vpop.f32.mrf.mxu0
    %v543 = vadd.f32 0.0, %v542
    %v544 = vpop.f32.mrf.mxu0
    %v545 = vadd.f32 0.0, %v544
    %546 = vdwg.mxu0
    %v563 = vunpack.c.l.b16 %v402
    %v564 = vunpack.c.l.b16 %v403
    %v565 = vunpack.c.l.b16 %v404
    %v566 = vunpack.c.l.b16 %v405
    %v567 = vunpack.c.l.b16 %v406
    %v568 = vunpack.c.l.b16 %v407
    %v569 = vunpack.c.l.b16 %v408
    %v570 = vunpack.c.l.b16 %v409
    %v571 = vunpack.c.l.b16 %v410
    %v572 = vunpack.c.l.b16 %v411
    %v573 = vunpack.c.l.b16 %v412
    %v574 = vunpack.c.l.b16 %v413
    %v575 = vunpack.c.l.b16 %v414
    %v576 = vunpack.c.l.b16 %v415
    %v577 = vunpack.c.l.b16 %v416
    %v578 = vunpack.c.l.b16 %v417
    %v579 = vpack.c.b16 %v564, %v563
    %v580 = vpack.c.b16 %v566, %v565
    %v581 = vpack.c.b16 %v568, %v567
    %v582 = vpack.c.b16 %v570, %v569
    %v583 = vpack.c.b16 %v572, %v571
    %v584 = vpack.c.b16 %v574, %v573
    %v585 = vpack.c.b16 %v576, %v575
    %v586 = vpack.c.b16 %v578, %v577
    %v611 = vunpack.c.l.b16 %v418
    %v612 = vunpack.c.l.b16 %v419
    %v613 = vunpack.c.l.b16 %v420
    %v614 = vunpack.c.l.b16 %v421
    %v615 = vunpack.c.l.b16 %v422
    %v616 = vunpack.c.l.b16 %v423
    %v617 = vunpack.c.l.b16 %v424
    %v618 = vunpack.c.l.b16 %v425
    %v619 = vunpack.c.l.b16 %v426
    %v620 = vunpack.c.l.b16 %v427
    %v621 = vunpack.c.l.b16 %v428
    %v622 = vunpack.c.l.b16 %v429
    %v623 = vunpack.c.l.b16 %v430
    %v624 = vunpack.c.l.b16 %v431
    %v625 = vunpack.c.l.b16 %v432
    %v626 = vunpack.c.l.b16 %v433
    %v627 = vpack.c.b16 %v612, %v611
    %v628 = vpack.c.b16 %v614, %v613
    %v629 = vpack.c.b16 %v616, %v615
    %v630 = vpack.c.b16 %v618, %v617
    %v631 = vpack.c.b16 %v620, %v619
    %v632 = vpack.c.b16 %v622, %v621
    %v633 = vpack.c.b16 %v624, %v623
    %v634 = vpack.c.b16 %v626, %v625
    %643 = vmatpush.bf16.msra.mxu0 %v634
    %644 = vmatpush.bf16.msra.mxu0 %v633
    %645 = vmatpush.bf16.msra.mxu0 %v632
    %646 = vmatpush.bf16.msra.mxu0 %v631
    %647 = vmatpush.bf16.msra.mxu0 %v630
    %648 = vmatpush.bf16.msra.mxu0 %v629
    %649 = vmatpush.bf16.msra.mxu0 %v628
    %650 = vmatpush.bf16.msra.mxu0 %v627
    %651 = vmatmul.bf16.gmra.mxu0 %v579
    %v652 = vpop.f32.mrf.mxu0
    %v653 = vadd.f32 %v508, %v652
    %v654 = vpop.f32.mrf.mxu0
    %v655 = vadd.f32 %v510, %v654
    %656 = vmatmul.bf16.gmra.mxu0 %v580
    %v657 = vpop.f32.mrf.mxu0
    %v658 = vadd.f32 %v513, %v657
    %v659 = vpop.f32.mrf.mxu0
    %v660 = vadd.f32 %v515, %v659
    %661 = vmatmul.bf16.gmra.mxu0 %v581
    %v662 = vpop.f32.mrf.mxu0
    %v663 = vadd.f32 %v518, %v662
    %v664 = vpop.f32.mrf.mxu0
    %v665 = vadd.f32 %v520, %v664
    %666 = vmatmul.bf16.gmra.mxu0 %v582
    %v667 = vpop.f32.mrf.mxu0
    %v668 = vadd.f32 %v523, %v667
    %v669 = vpop.f32.mrf.mxu0
    %v670 = vadd.f32 %v525, %v669
    %671 = vmatmul.bf16.gmra.mxu0 %v583
    %v672 = vpop.f32.mrf.mxu0
    %v673 = vadd.f32 %v528, %v672
    %v674 = vpop.f32.mrf.mxu0
    %v675 = vadd.f32 %v530, %v674
    %676 = vmatmul.bf16.gmra.mxu0 %v584
    %v677 = vpop.f32.mrf.mxu0
    %v678 = vadd.f32 %v533, %v677
    %v679 = vpop.f32.mrf.mxu0
    %v680 = vadd.f32 %v535, %v679
    %681 = vmatmul.bf16.gmra.mxu0 %v585
    %v682 = vpop.f32.mrf.mxu0
    %v683 = vadd.f32 %v538, %v682
    %v684 = vpop.f32.mrf.mxu0
    %v685 = vadd.f32 %v540, %v684
    %686 = vmatmul.bf16.gmra.mxu0 %v586
    %v687 = vpop.f32.mrf.mxu0
    %v688 = vadd.f32 %v543, %v687
    %v689 = vpop.f32.mrf.mxu0
    %v690 = vadd.f32 %v545, %v689
    %691 = vdwg.mxu0
    %v692 = vld [vmem:[%s6] sm:$0x1]
    %v694 = vperm.slane %v692, 0
    %v696 = vadd.f32 %v653, %v694
    %v697 = vadd.f32 %v655, %v694
    %v698 = vadd.f32 %v658, %v694
    %v699 = vadd.f32 %v660, %v694
    %v700 = vadd.f32 %v663, %v694
    %v701 = vadd.f32 %v665, %v694
    %v702 = vadd.f32 %v668, %v694
    %v703 = vadd.f32 %v670, %v694
    %v704 = vadd.f32 %v673, %v694
    %v705 = vadd.f32 %v675, %v694
    %v706 = vadd.f32 %v678, %v694
    %v707 = vadd.f32 %v680, %v694
    %v708 = vadd.f32 %v683, %v694
    %v709 = vadd.f32 %v685, %v694
    %v710 = vadd.f32 %v688, %v694
    %v711 = vadd.f32 %v690, %v694
    %v712 = vmax.f32 %v696, 0.0
    %v713 = vmax.f32 %v697, 0.0
    %v714 = vmax.f32 %v698, 0.0
    %v715 = vmax.f32 %v699, 0.0
    %v716 = vmax.f32 %v700, 0.0
    %v717 = vmax.f32 %v701, 0.0
    %v718 = vmax.f32 %v702, 0.0
    %v719 = vmax.f32 %v703, 0.0
    %v720 = vmax.f32 %v704, 0.0
    %v721 = vmax.f32 %v705, 0.0
    %v722 = vmax.f32 %v706, 0.0
    %v723 = vmax.f32 %v707, 0.0
    %v724 = vmax.f32 %v708, 0.0
    %v725 = vmax.f32 %v709, 0.0
    %v726 = vmax.f32 %v710, 0.0
    %v727 = vmax.f32 %v711, 0.0
    %v728 = vpack.c.bf16 %v712, %v712
    %v729 = vpack.c.bf16 %v713, %v713
    %v730 = vpack.c.bf16 %v714, %v714
    %v731 = vpack.c.bf16 %v715, %v715
    %v732 = vpack.c.bf16 %v716, %v716
    %v733 = vpack.c.bf16 %v717, %v717
    %v734 = vpack.c.bf16 %v718, %v718
    %v735 = vpack.c.bf16 %v719, %v719
    %v736 = vpack.c.bf16 %v720, %v720
    %v737 = vpack.c.bf16 %v721, %v721
    %v738 = vpack.c.bf16 %v722, %v722
    %v739 = vpack.c.bf16 %v723, %v723
    %v740 = vpack.c.bf16 %v724, %v724
    %v741 = vpack.c.bf16 %v725, %v725
    %v742 = vpack.c.bf16 %v726, %v726
    %v743 = vpack.c.bf16 %v727, %v727
    %744 = vst [vmem:[%s7] sm:$0xf] %v728
    %745 = vst [vmem:[%s7 + $0x4] sm:$0xf] %v729
    %746 = vst [vmem:[%s7 + $0x8] sm:$0xf] %v730
    %747 = vst [vmem:[%s7 + $0xc] sm:$0xf] %v731
    %748 = vst [vmem:[%s7 + $0x10] sm:$0xf] %v732
    %749 = vst [vmem:[%s7 + $0x14] sm:$0xf] %v733
    %750 = vst [vmem:[%s7 + $0x18] sm:$0xf] %v734
    %751 = vst [vmem:[%s7 + $0x1c] sm:$0xf] %v735
    %752 = vst [vmem:[%s7 + $0x20] sm:$0xf] %v736
    %753 = vst [vmem:[%s7 + $0x24] sm:$0xf] %v737
    %754 = vst [vmem:[%s7 + $0x28] sm:$0xf] %v738
    %755 = vst [vmem:[%s7 + $0x2c] sm:$0xf] %v739
    %756 = vst [vmem:[%s7 + $0x30] sm:$0xf] %v740
    %757 = vst [vmem:[%s7 + $0x34] sm:$0xf] %v741
    %758 = vst [vmem:[%s7 + $0x38] sm:$0xf] %v742
    %759 = vst [vmem:[%s7 + $0x3c] sm:$0xf] %v743
  $region37: #{sage_model_forward.7} parent=0 // pred_fallthru
    _
  // Predicated region
  $region38: #{sage_model_forward.7} parent=0 // pred_check
    _
  $region39: #{sage_model_forward.7} parent=0 // pred_check_branch
    %761 = sbr.rel (0) target = $region41
  $region40: #{sage_model_forward.7} parent=0 // pred_region
    _
  $region41: #{sage_model_forward.7} parent=0 // pred_fallthru
    _
  // Predicated region
  $region42: #{sage_model_forward.7} parent=0 // pred_check
    _
  $region43: #{sage_model_forward.7} parent=0 // pred_check_branch
    %763 = sbr.rel (0) target = $region45
  $region44: #{sage_model_forward.7} parent=0 // pred_region
    _
  $region45: #{sage_model_forward.7} parent=0 // pred_fallthru
    _

// kernel: sage_model_forward.9
$region0: #{sage_model_forward.9}
  #allocation0 [shape = 'u32[]', space=smem, size = 0x4, offset = 0x4, fixed_abs, tag = 'smem constant byte address 0x4 - core index']
  #allocation1 [shape = 'u32[72,128]{1,0:T(1,128)}', space=vmem, size = 0x9000, scoped, tag = 'internal scratch']
  %s0 = inlined_call_operand.vmem [shape: bf16[128,128], index: 0, kind: input, shape index: {}]
  %s1 = inlined_call_operand.vmem [shape: bf16[128,128], index: 1, kind: input, shape index: {}]
  %s2 = inlined_call_operand.vmem [shape: bf16[128,128], index: 2, kind: input, shape index: {}]
  %s3 = inlined_call_operand.vmem [shape: bf16[128,128], index: 3, kind: input, shape index: {}]
  %s4 = inlined_call_operand.vmem [shape: bf16[128,128], index: 4, kind: input, shape index: {}]
  %s5 = inlined_call_operand.vmem [shape: bf16[128,128], index: 5, kind: input, shape index: {}]
  %s6 = inlined_call_operand.vmem [shape: f32[1,128], index: 6, kind: input, shape index: {}]
  %s7 = inlined_call_operand.vmem [shape: bf16[128,128], index: 7, kind: input, shape index: {}]
  %s8 = inlined_call_operand.vmem [shape: f32[1,128], index: 8, kind: input, shape index: {}]
  %s9 = inlined_call_operand.vmem [shape: f32[128,128], index: 9, kind: output, shape index: {}]
  %s10 = sld [smem:[#allocation0]]
  $region46: #{sage_model_forward.9} parent=0
    _
  %s12 = ssub.s32 1, %s10
  %s13 = scalar_select 0, %s12, %s10
  // Predicated region
  $region2: #{sage_model_forward.9} parent=0 // pred_check
    _
  $region3: #{sage_model_forward.9} parent=0 // pred_check_branch
    %15 = sbr.rel (0) target = $region5
  $region4: #{sage_model_forward.9} parent=0 // pred_region
    _
  $region5: #{sage_model_forward.9} parent=0 // pred_fallthru
    _
  // Predicated region
  $region6: #{sage_model_forward.9} parent=0 // pred_check
    _
  $region7: #{sage_model_forward.9} parent=0 // pred_check_branch
    %17 = sbr.rel (0) target = $region9
  $region8: #{sage_model_forward.9} parent=0 // pred_region
    _
  $region9: #{sage_model_forward.9} parent=0 // pred_fallthru
    _
  // Predicated region
  $region10: #{sage_model_forward.9} parent=0 // pred_check
    _
  $region11: #{sage_model_forward.9} parent=0 // pred_check_branch
    %19 = sbr.rel (0) target = $region13
  $region12: #{sage_model_forward.9} parent=0 // pred_region
    _
  $region13: #{sage_model_forward.9} parent=0 // pred_fallthru
    _
  // Predicated region
  $region14: #{sage_model_forward.9} parent=0 // pred_check
    _
  $region15: #{sage_model_forward.9} parent=0 // pred_check_branch
    %21 = sbr.rel (0) target = $region17
  $region16: #{sage_model_forward.9} parent=0 // pred_region
    _
  $region17: #{sage_model_forward.9} parent=0 // pred_fallthru
    _
  // Predicated region
  $region18: #{sage_model_forward.9} parent=0 // pred_check
    _
  $region19: #{sage_model_forward.9} parent=0 // pred_check_branch
    %23 = sbr.rel (0) target = $region21
  $region20: #{sage_model_forward.9} parent=0 // pred_region
    _
  $region21: #{sage_model_forward.9} parent=0 // pred_fallthru
    _
  // Predicated region
  $region22: #{sage_model_forward.9} parent=0 // pred_check
    _
  $region23: #{sage_model_forward.9} parent=0 // pred_check_branch
    %25 = sbr.rel (0) target = $region25
  $region24: #{sage_model_forward.9} parent=0 // pred_region
    _
  $region25: #{sage_model_forward.9} parent=0 // pred_fallthru
    _
  // Predicated region
  $region26: #{sage_model_forward.9} parent=0 // pred_check
    _
  $region27: #{sage_model_forward.9} parent=0 // pred_check_branch
    %27 = sbr.rel (0) target = $region29
  $region28: #{sage_model_forward.9} parent=0 // pred_region
    _
  $region29: #{sage_model_forward.9} parent=0 // pred_fallthru
    _
  // Predicated region
  $region30: #{sage_model_forward.9} parent=0 // pred_check
    _
  $region31: #{sage_model_forward.9} parent=0 // pred_check_branch
    %29 = sbr.rel (0) target = $region33
  $region32: #{sage_model_forward.9} parent=0 // pred_region
    _
  $region33: #{sage_model_forward.9} parent=0 // pred_fallthru
    _
  // Predicated region
  $region34: #{sage_model_forward.9} parent=0 // pred_check
    _
  $region35: #{sage_model_forward.9} parent=0 // pred_check_branch
    %31 = sbr.rel (0) target = $region37
  $region36: #{sage_model_forward.9} parent=0 // pred_region
    _
  $region37: #{sage_model_forward.9} parent=0 // pred_fallthru
    _
  %v32 = vld [vmem:[%s0] sm:$0xf]
  %v33 = vld [vmem:[%s0 + $0x4] sm:$0xf]
  %v34 = vld [vmem:[%s0 + $0x8] sm:$0xf]
  %v35 = vld [vmem:[%s0 + $0xc] sm:$0xf]
  %v36 = vld [vmem:[%s0 + $0x10] sm:$0xf]
  %v37 = vld [vmem:[%s0 + $0x14] sm:$0xf]
  %v38 = vld [vmem:[%s0 + $0x18] sm:$0xf]
  %v39 = vld [vmem:[%s0 + $0x1c] sm:$0xf]
  %v40 = vld [vmem:[%s0 + $0x20] sm:$0xf]
  %v41 = vld [vmem:[%s0 + $0x24] sm:$0xf]
  %v42 = vld [vmem:[%s0 + $0x28] sm:$0xf]
  %v43 = vld [vmem:[%s0 + $0x2c] sm:$0xf]
  %v44 = vld [vmem:[%s0 + $0x30] sm:$0xf]
  %v45 = vld [vmem:[%s0 + $0x34] sm:$0xf]
  %v46 = vld [vmem:[%s0 + $0x38] sm:$0xf]
  %v47 = vld [vmem:[%s0 + $0x3c] sm:$0xf]
  %v48 = vld [vmem:[%s3] sm:$0xf]
  %v49 = vld [vmem:[%s3 + $0x4] sm:$0xf]
  %v50 = vld [vmem:[%s3 + $0x8] sm:$0xf]
  %v51 = vld [vmem:[%s3 + $0xc] sm:$0xf]
  %v52 = vld [vmem:[%s3 + $0x10] sm:$0xf]
  %v53 = vld [vmem:[%s3 + $0x14] sm:$0xf]
  %v54 = vld [vmem:[%s3 + $0x18] sm:$0xf]
  %v55 = vld [vmem:[%s3 + $0x1c] sm:$0xf]
  %v56 = vld [vmem:[%s3 + $0x20] sm:$0xf]
  %v57 = vld [vmem:[%s3 + $0x24] sm:$0xf]
  %v58 = vld [vmem:[%s3 + $0x28] sm:$0xf]
  %v59 = vld [vmem:[%s3 + $0x2c] sm:$0xf]
  %v60 = vld [vmem:[%s3 + $0x30] sm:$0xf]
  %v61 = vld [vmem:[%s3 + $0x34] sm:$0xf]
  %v62 = vld [vmem:[%s3 + $0x38] sm:$0xf]
  %v63 = vld [vmem:[%s3 + $0x3c] sm:$0xf]
  %v64 = vld [vmem:[%s1] sm:$0xf]
  %v65 = vld [vmem:[%s1 + $0x4] sm:$0xf]
  %v66 = vld [vmem:[%s1 + $0x8] sm:$0xf]
  %v67 = vld [vmem:[%s1 + $0xc] sm:$0xf]
  %v68 = vld [vmem:[%s1 + $0x10] sm:$0xf]
  %v69 = vld [vmem:[%s1 + $0x14] sm:$0xf]
  %v70 = vld [vmem:[%s1 + $0x18] sm:$0xf]
  %v71 = vld [vmem:[%s1 + $0x1c] sm:$0xf]
  %v72 = vld [vmem:[%s1 + $0x20] sm:$0xf]
  %v73 = vld [vmem:[%s1 + $0x24] sm:$0xf]
  %v74 = vld [vmem:[%s1 + $0x28] sm:$0xf]
  %v75 = vld [vmem:[%s1 + $0x2c] sm:$0xf]
  %v76 = vld [vmem:[%s1 + $0x30] sm:$0xf]
  %v77 = vld [vmem:[%s1 + $0x34] sm:$0xf]
  %v78 = vld [vmem:[%s1 + $0x38] sm:$0xf]
  %v79 = vld [vmem:[%s1 + $0x3c] sm:$0xf]
  %v80 = vld [vmem:[%s4] sm:$0xf]
  %v81 = vld [vmem:[%s4 + $0x4] sm:$0xf]
  %v82 = vld [vmem:[%s4 + $0x8] sm:$0xf]
  %v83 = vld [vmem:[%s4 + $0xc] sm:$0xf]
  %v84 = vld [vmem:[%s4 + $0x10] sm:$0xf]
  %v85 = vld [vmem:[%s4 + $0x14] sm:$0xf]
  %v86 = vld [vmem:[%s4 + $0x18] sm:$0xf]
  %v87 = vld [vmem:[%s4 + $0x1c] sm:$0xf]
  %v88 = vld [vmem:[%s4 + $0x20] sm:$0xf]
  %v89 = vld [vmem:[%s4 + $0x24] sm:$0xf]
  %v90 = vld [vmem:[%s4 + $0x28] sm:$0xf]
  %v91 = vld [vmem:[%s4 + $0x2c] sm:$0xf]
  %v92 = vld [vmem:[%s4 + $0x30] sm:$0xf]
  %v93 = vld [vmem:[%s4 + $0x34] sm:$0xf]
  %v94 = vld [vmem:[%s4 + $0x38] sm:$0xf]
  %v95 = vld [vmem:[%s4 + $0x3c] sm:$0xf]
  %v112 = vunpack.c.l.b16 %v64
  %v113 = vunpack.c.l.b16 %v65
  %v114 = vunpack.c.l.b16 %v66
  %v115 = vunpack.c.l.b16 %v67
  %v116 = vunpack.c.l.b16 %v68
  %v117 = vunpack.c.l.b16 %v69
  %v118 = vunpack.c.l.b16 %v70
  %v119 = vunpack.c.l.b16 %v71
  %v120 = vunpack.c.l.b16 %v72
  %v121 = vunpack.c.l.b16 %v73
  %v122 = vunpack.c.l.b16 %v74
  %v123 = vunpack.c.l.b16 %v75
  %v124 = vunpack.c.l.b16 %v76
  %v125 = vunpack.c.l.b16 %v77
  %v126 = vunpack.c.l.b16 %v78
  %v127 = vunpack.c.l.b16 %v79
  %v128 = vpack.c.b16 %v113, %v112
  %v129 = vpack.c.b16 %v115, %v114
  %v130 = vpack.c.b16 %v117, %v116
  %v131 = vpack.c.b16 %v119, %v118
  %v132 = vpack.c.b16 %v121, %v120
  %v133 = vpack.c.b16 %v123, %v122
  %v134 = vpack.c.b16 %v125, %v124
  %v135 = vpack.c.b16 %v127, %v126
  %v160 = vunpack.c.l.b16 %v80
  %v161 = vunpack.c.l.b16 %v81
  %v162 = vunpack.c.l.b16 %v82
  %v163 = vunpack.c.l.b16 %v83
  %v164 = vunpack.c.l.b16 %v84
  %v165 = vunpack.c.l.b16 %v85
  %v166 = vunpack.c.l.b16 %v86
  %v167 = vunpack.c.l.b16 %v87
  %v168 = vunpack.c.l.b16 %v88
  %v169 = vunpack.c.l.b16 %v89
  %v170 = vunpack.c.l.b16 %v90
  %v171 = vunpack.c.l.b16 %v91
  %v172 = vunpack.c.l.b16 %v92
  %v173 = vunpack.c.l.b16 %v93
  %v174 = vunpack.c.l.b16 %v94
  %v175 = vunpack.c.l.b16 %v95
  %v176 = vpack.c.b16 %v161, %v160
  %v177 = vpack.c.b16 %v163, %v162
  %v178 = vpack.c.b16 %v165, %v164
  %v179 = vpack.c.b16 %v167, %v166
  %v180 = vpack.c.b16 %v169, %v168
  %v181 = vpack.c.b16 %v171, %v170
  %v182 = vpack.c.b16 %v173, %v172
  %v183 = vpack.c.b16 %v175, %v174
  %192 = vmatpush.bf16.msra.mxu0 %v183
  %193 = vmatpush.bf16.msra.mxu0 %v182
  %194 = vmatpush.bf16.msra.mxu0 %v181
  %195 = vmatpush.bf16.msra.mxu0 %v180
  %196 = vmatpush.bf16.msra.mxu0 %v179
  %197 = vmatpush.bf16.msra.mxu0 %v178
  %198 = vmatpush.bf16.msra.mxu0 %v177
  %199 = vmatpush.bf16.msra.mxu0 %v176
  %200 = vmatmul.bf16.gmra.mxu0 %v128
  %v201 = vpop.f32.mrf.mxu0
  %v202 = vadd.f32 0.0, %v201
  %v203 = vpop.f32.mrf.mxu0
  %v204 = vadd.f32 0.0, %v203
  %205 = vmatmul.bf16.gmra.mxu0 %v129
  %v206 = vpop.f32.mrf.mxu0
  %v207 = vadd.f32 0.0, %v206
  %v208 = vpop.f32.mrf.mxu0
  %v209 = vadd.f32 0.0, %v208
  %210 = vmatmul.bf16.gmra.mxu0 %v130
  %v211 = vpop.f32.mrf.mxu0
  %v212 = vadd.f32 0.0, %v211
  %v213 = vpop.f32.mrf.mxu0
  %v214 = vadd.f32 0.0, %v213
  %215 = vmatmul.bf16.gmra.mxu0 %v131
  %v216 = vpop.f32.mrf.mxu0
  %v217 = vadd.f32 0.0, %v216
  %v218 = vpop.f32.mrf.mxu0
  %v219 = vadd.f32 0.0, %v218
  %220 = vmatmul.bf16.gmra.mxu0 %v132
  %v221 = vpop.f32.mrf.mxu0
  %v222 = vadd.f32 0.0, %v221
  %v223 = vpop.f32.mrf.mxu0
  %v224 = vadd.f32 0.0, %v223
  %225 = vmatmul.bf16.gmra.mxu0 %v133
  %v226 = vpop.f32.mrf.mxu0
  %v227 = vadd.f32 0.0, %v226
  %v228 = vpop.f32.mrf.mxu0
  %v229 = vadd.f32 0.0, %v228
  %230 = vmatmul.bf16.gmra.mxu0 %v134
  %v231 = vpop.f32.mrf.mxu0
  %v232 = vadd.f32 0.0, %v231
  %v233 = vpop.f32.mrf.mxu0
  %v234 = vadd.f32 0.0, %v233
  %235 = vmatmul.bf16.gmra.mxu0 %v135
  %v236 = vpop.f32.mrf.mxu0
  %v237 = vadd.f32 0.0, %v236
  %v238 = vpop.f32.mrf.mxu0
  %v239 = vadd.f32 0.0, %v238
  %240 = vdwg.mxu0
  %v257 = vunpack.c.l.b16 %v32
  %v258 = vunpack.c.l.b16 %v33
  %v259 = vunpack.c.l.b16 %v34
  %v260 = vunpack.c.l.b16 %v35
  %v261 = vunpack.c.l.b16 %v36
  %v262 = vunpack.c.l.b16 %v37
  %v263 = vunpack.c.l.b16 %v38
  %v264 = vunpack.c.l.b16 %v39
  %v265 = vunpack.c.l.b16 %v40
  %v266 = vunpack.c.l.b16 %v41
  %v267 = vunpack.c.l.b16 %v42
  %v268 = vunpack.c.l.b16 %v43
  %v269 = vunpack.c.l.b16 %v44
  %v270 = vunpack.c.l.b16 %v45
  %v271 = vunpack.c.l.b16 %v46
  %v272 = vunpack.c.l.b16 %v47
  %v273 = vpack.c.b16 %v258, %v257
  %v274 = vpack.c.b16 %v260, %v259
  %v275 = vpack.c.b16 %v262, %v261
  %v276 = vpack.c.b16 %v264, %v263
  %v277 = vpack.c.b16 %v266, %v265
  %v278 = vpack.c.b16 %v268, %v267
  %v279 = vpack.c.b16 %v270, %v269
  %v280 = vpack.c.b16 %v272, %v271
  %v305 = vunpack.c.l.b16 %v48
  %v306 = vunpack.c.l.b16 %v49
  %v307 = vunpack.c.l.b16 %v50
  %v308 = vunpack.c.l.b16 %v51
  %v309 = vunpack.c.l.b16 %v52
  %v310 = vunpack.c.l.b16 %v53
  %v311 = vunpack.c.l.b16 %v54
  %v312 = vunpack.c.l.b16 %v55
  %v313 = vunpack.c.l.b16 %v56
  %v314 = vunpack.c.l.b16 %v57
  %v315 = vunpack.c.l.b16 %v58
  %v316 = vunpack.c.l.b16 %v59
  %v317 = vunpack.c.l.b16 %v60
  %v318 = vunpack.c.l.b16 %v61
  %v319 = vunpack.c.l.b16 %v62
  %v320 = vunpack.c.l.b16 %v63
  %v321 = vpack.c.b16 %v306, %v305
  %v322 = vpack.c.b16 %v308, %v307
  %v323 = vpack.c.b16 %v310, %v309
  %v324 = vpack.c.b16 %v312, %v311
  %v325 = vpack.c.b16 %v314, %v313
  %v326 = vpack.c.b16 %v316, %v315
  %v327 = vpack.c.b16 %v318, %v317
  %v328 = vpack.c.b16 %v320, %v319
  %337 = vmatpush.bf16.msra.mxu0 %v328
  %338 = vmatpush.bf16.msra.mxu0 %v327
  %339 = vmatpush.bf16.msra.mxu0 %v326
  %340 = vmatpush.bf16.msra.mxu0 %v325
  %341 = vmatpush.bf16.msra.mxu0 %v324
  %342 = vmatpush.bf16.msra.mxu0 %v323
  %343 = vmatpush.bf16.msra.mxu0 %v322
  %344 = vmatpush.bf16.msra.mxu0 %v321
  %345 = vmatmul.bf16.gmra.mxu0 %v273
  %v346 = vpop.f32.mrf.mxu0
  %v347 = vadd.f32 %v202, %v346
  %v348 = vpop.f32.mrf.mxu0
  %v349 = vadd.f32 %v204, %v348
  %350 = vmatmul.bf16.gmra.mxu0 %v274
  %v351 = vpop.f32.mrf.mxu0
  %v352 = vadd.f32 %v207, %v351
  %v353 = vpop.f32.mrf.mxu0
  %v354 = vadd.f32 %v209, %v353
  %355 = vmatmul.bf16.gmra.mxu0 %v275
  %v356 = vpop.f32.mrf.mxu0
  %v357 = vadd.f32 %v212, %v356
  %v358 = vpop.f32.mrf.mxu0
  %v359 = vadd.f32 %v214, %v358
  %360 = vmatmul.bf16.gmra.mxu0 %v276
  %v361 = vpop.f32.mrf.mxu0
  %v362 = vadd.f32 %v217, %v361
  %v363 = vpop.f32.mrf.mxu0
  %v364 = vadd.f32 %v219, %v363
  %365 = vmatmul.bf16.gmra.mxu0 %v277
  %v366 = vpop.f32.mrf.mxu0
  %v367 = vadd.f32 %v222, %v366
  %v368 = vpop.f32.mrf.mxu0
  %v369 = vadd.f32 %v224, %v368
  %370 = vmatmul.bf16.gmra.mxu0 %v278
  %v371 = vpop.f32.mrf.mxu0
  %v372 = vadd.f32 %v227, %v371
  %v373 = vpop.f32.mrf.mxu0
  %v374 = vadd.f32 %v229, %v373
  %375 = vmatmul.bf16.gmra.mxu0 %v279
  %v376 = vpop.f32.mrf.mxu0
  %v377 = vadd.f32 %v232, %v376
  %v378 = vpop.f32.mrf.mxu0
  %v379 = vadd.f32 %v234, %v378
  %380 = vmatmul.bf16.gmra.mxu0 %v280
  %v381 = vpop.f32.mrf.mxu0
  %v382 = vadd.f32 %v237, %v381
  %v383 = vpop.f32.mrf.mxu0
  %v384 = vadd.f32 %v239, %v383
  %385 = vdwg.mxu0
  %v386 = vld [vmem:[%s2] sm:$0xf]
  %v387 = vld [vmem:[%s2 + $0x4] sm:$0xf]
  %v388 = vld [vmem:[%s2 + $0x8] sm:$0xf]
  %v389 = vld [vmem:[%s2 + $0xc] sm:$0xf]
  %v390 = vld [vmem:[%s2 + $0x10] sm:$0xf]
  %v391 = vld [vmem:[%s2 + $0x14] sm:$0xf]
  %v392 = vld [vmem:[%s2 + $0x18] sm:$0xf]
  %v393 = vld [vmem:[%s2 + $0x1c] sm:$0xf]
  %v394 = vld [vmem:[%s2 + $0x20] sm:$0xf]
  %v395 = vld [vmem:[%s2 + $0x24] sm:$0xf]
  %v396 = vld [vmem:[%s2 + $0x28] sm:$0xf]
  %v397 = vld [vmem:[%s2 + $0x2c] sm:$0xf]
  %v398 = vld [vmem:[%s2 + $0x30] sm:$0xf]
  %v399 = vld [vmem:[%s2 + $0x34] sm:$0xf]
  %v400 = vld [vmem:[%s2 + $0x38] sm:$0xf]
  %v401 = vld [vmem:[%s2 + $0x3c] sm:$0xf]
  %v402 = vld [vmem:[%s5] sm:$0xf]
  %v403 = vld [vmem:[%s5 + $0x4] sm:$0xf]
  %v404 = vld [vmem:[%s5 + $0x8] sm:$0xf]
  %v405 = vld [vmem:[%s5 + $0xc] sm:$0xf]
  %v406 = vld [vmem:[%s5 + $0x10] sm:$0xf]
  %v407 = vld [vmem:[%s5 + $0x14] sm:$0xf]
  %v408 = vld [vmem:[%s5 + $0x18] sm:$0xf]
  %v409 = vld [vmem:[%s5 + $0x1c] sm:$0xf]
  %v410 = vld [vmem:[%s5 + $0x20] sm:$0xf]
  %v411 = vld [vmem:[%s5 + $0x24] sm:$0xf]
  %v412 = vld [vmem:[%s5 + $0x28] sm:$0xf]
  %v413 = vld [vmem:[%s5 + $0x2c] sm:$0xf]
  %v414 = vld [vmem:[%s5 + $0x30] sm:$0xf]
  %v415 = vld [vmem:[%s5 + $0x34] sm:$0xf]
  %v416 = vld [vmem:[%s5 + $0x38] sm:$0xf]
  %v417 = vld [vmem:[%s5 + $0x3c] sm:$0xf]
  %v434 = vunpack.c.l.b16 %v386
  %v435 = vunpack.c.l.b16 %v387
  %v436 = vunpack.c.l.b16 %v388
  %v437 = vunpack.c.l.b16 %v389
  %v438 = vunpack.c.l.b16 %v390
  %v439 = vunpack.c.l.b16 %v391
  %v440 = vunpack.c.l.b16 %v392
  %v441 = vunpack.c.l.b16 %v393
  %v442 = vunpack.c.l.b16 %v394
  %v443 = vunpack.c.l.b16 %v395
  %v444 = vunpack.c.l.b16 %v396
  %v445 = vunpack.c.l.b16 %v397
  %v446 = vunpack.c.l.b16 %v398
  %v447 = vunpack.c.l.b16 %v399
  %v448 = vunpack.c.l.b16 %v400
  %v449 = vunpack.c.l.b16 %v401
  %v450 = vpack.c.b16 %v435, %v434
  %v451 = vpack.c.b16 %v437, %v436
  %v452 = vpack.c.b16 %v439, %v438
  %v453 = vpack.c.b16 %v441, %v440
  %v454 = vpack.c.b16 %v443, %v442
  %v455 = vpack.c.b16 %v445, %v444
  %v456 = vpack.c.b16 %v447, %v446
  %v457 = vpack.c.b16 %v449, %v448
  %v482 = vunpack.c.l.b16 %v402
  %v483 = vunpack.c.l.b16 %v403
  %v484 = vunpack.c.l.b16 %v404
  %v485 = vunpack.c.l.b16 %v405
  %v486 = vunpack.c.l.b16 %v406
  %v487 = vunpack.c.l.b16 %v407
  %v488 = vunpack.c.l.b16 %v408
  %v489 = vunpack.c.l.b16 %v409
  %v490 = vunpack.c.l.b16 %v410
  %v491 = vunpack.c.l.b16 %v411
  %v492 = vunpack.c.l.b16 %v412
  %v493 = vunpack.c.l.b16 %v413
  %v494 = vunpack.c.l.b16 %v414
  %v495 = vunpack.c.l.b16 %v415
  %v496 = vunpack.c.l.b16 %v416
  %v497 = vunpack.c.l.b16 %v417
  %v498 = vpack.c.b16 %v483, %v482
  %v499 = vpack.c.b16 %v485, %v484
  %v500 = vpack.c.b16 %v487, %v486
  %v501 = vpack.c.b16 %v489, %v488
  %v502 = vpack.c.b16 %v491, %v490
  %v503 = vpack.c.b16 %v493, %v492
  %v504 = vpack.c.b16 %v495, %v494
  %v505 = vpack.c.b16 %v497, %v496
  %514 = vmatpush.bf16.msra.mxu0 %v505
  %515 = vmatpush.bf16.msra.mxu0 %v504
  %516 = vmatpush.bf16.msra.mxu0 %v503
  %517 = vmatpush.bf16.msra.mxu0 %v502
  %518 = vmatpush.bf16.msra.mxu0 %v501
  %519 = vmatpush.bf16.msra.mxu0 %v500
  %520 = vmatpush.bf16.msra.mxu0 %v499
  %521 = vmatpush.bf16.msra.mxu0 %v498
  %522 = vmatmul.bf16.gmra.mxu0 %v450
  %v523 = vpop.f32.mrf.mxu0
  %v524 = vadd.f32 0.0, %v523
  %v525 = vpop.f32.mrf.mxu0
  %v526 = vadd.f32 0.0, %v525
  %527 = vmatmul.bf16.gmra.mxu0 %v451
  %v528 = vpop.f32.mrf.mxu0
  %v529 = vadd.f32 0.0, %v528
  %v530 = vpop.f32.mrf.mxu0
  %v531 = vadd.f32 0.0, %v530
  %532 = vmatmul.bf16.gmra.mxu0 %v452
  %v533 = vpop.f32.mrf.mxu0
  %v534 = vadd.f32 0.0, %v533
  %v535 = vpop.f32.mrf.mxu0
  %v536 = vadd.f32 0.0, %v535
  %537 = vmatmul.bf16.gmra.mxu0 %v453
  %v538 = vpop.f32.mrf.mxu0
  %v539 = vadd.f32 0.0, %v538
  %v540 = vpop.f32.mrf.mxu0
  %v541 = vadd.f32 0.0, %v540
  %542 = vmatmul.bf16.gmra.mxu0 %v454
  %v543 = vpop.f32.mrf.mxu0
  %v544 = vadd.f32 0.0, %v543
  %v545 = vpop.f32.mrf.mxu0
  %v546 = vadd.f32 0.0, %v545
  %547 = vmatmul.bf16.gmra.mxu0 %v455
  %v548 = vpop.f32.mrf.mxu0
  %v549 = vadd.f32 0.0, %v548
  %v550 = vpop.f32.mrf.mxu0
  %v551 = vadd.f32 0.0, %v550
  %552 = vmatmul.bf16.gmra.mxu0 %v456
  %v553 = vpop.f32.mrf.mxu0
  %v554 = vadd.f32 0.0, %v553
  %v555 = vpop.f32.mrf.mxu0
  %v556 = vadd.f32 0.0, %v555
  %557 = vmatmul.bf16.gmra.mxu0 %v457
  %v558 = vpop.f32.mrf.mxu0
  %v559 = vadd.f32 0.0, %v558
  %v560 = vpop.f32.mrf.mxu0
  %v561 = vadd.f32 0.0, %v560
  %562 = vdwg.mxu0
  %v563 = vadd.f32 %v347, %v524
  %v564 = vadd.f32 %v349, %v526
  %v565 = vadd.f32 %v352, %v529
  %v566 = vadd.f32 %v354, %v531
  %v567 = vadd.f32 %v357, %v534
  %v568 = vadd.f32 %v359, %v536
  %v569 = vadd.f32 %v362, %v539
  %v570 = vadd.f32 %v364, %v541
  %v571 = vadd.f32 %v367, %v544
  %v572 = vadd.f32 %v369, %v546
  %v573 = vadd.f32 %v372, %v549
  %v574 = vadd.f32 %v374, %v551
  %v575 = vadd.f32 %v377, %v554
  %v576 = vadd.f32 %v379, %v556
  %v577 = vadd.f32 %v382, %v559
  %v578 = vadd.f32 %v384, %v561
  %v579 = vld [vmem:[%s6] sm:$0x1]
  %v581 = vperm.slane %v579, 0
  %v583 = vadd.f32 %v563, %v581
  %v584 = vadd.f32 %v564, %v581
  %v585 = vadd.f32 %v565, %v581
  %v586 = vadd.f32 %v566, %v581
  %v587 = vadd.f32 %v567, %v581
  %v588 = vadd.f32 %v568, %v581
  %v589 = vadd.f32 %v569, %v581
  %v590 = vadd.f32 %v570, %v581
  %v591 = vadd.f32 %v571, %v581
  %v592 = vadd.f32 %v572, %v581
  %v593 = vadd.f32 %v573, %v581
  %v594 = vadd.f32 %v574, %v581
  %v595 = vadd.f32 %v575, %v581
  %v596 = vadd.f32 %v576, %v581
  %v597 = vadd.f32 %v577, %v581
  %v598 = vadd.f32 %v578, %v581
  %v599 = vmax.f32 %v583, 0.0
  %v600 = vmax.f32 %v584, 0.0
  %v601 = vmax.f32 %v585, 0.0
  %v602 = vmax.f32 %v586, 0.0
  %v603 = vmax.f32 %v587, 0.0
  %v604 = vmax.f32 %v588, 0.0
  %v605 = vmax.f32 %v589, 0.0
  %v606 = vmax.f32 %v590, 0.0
  %v607 = vmax.f32 %v591, 0.0
  %v608 = vmax.f32 %v592, 0.0
  %v609 = vmax.f32 %v593, 0.0
  %v610 = vmax.f32 %v594, 0.0
  %v611 = vmax.f32 %v595, 0.0
  %v612 = vmax.f32 %v596, 0.0
  %v613 = vmax.f32 %v597, 0.0
  %v614 = vmax.f32 %v598, 0.0
  %v615 = vpack.c.bf16 %v600, %v599
  %v616 = vpack.c.bf16 %v602, %v601
  %v617 = vpack.c.bf16 %v604, %v603
  %v618 = vpack.c.bf16 %v606, %v605
  %v619 = vpack.c.bf16 %v608, %v607
  %v620 = vpack.c.bf16 %v610, %v609
  %v621 = vpack.c.bf16 %v612, %v611
  %v622 = vpack.c.bf16 %v614, %v613
  %v623 = vld [vmem:[%s7] sm:$0xf]
  %v624 = vld [vmem:[%s7 + $0x4] sm:$0xf]
  %v625 = vld [vmem:[%s7 + $0x8] sm:$0xf]
  %v626 = vld [vmem:[%s7 + $0xc] sm:$0xf]
  %v627 = vld [vmem:[%s7 + $0x10] sm:$0xf]
  %v628 = vld [vmem:[%s7 + $0x14] sm:$0xf]
  %v629 = vld [vmem:[%s7 + $0x18] sm:$0xf]
  %v630 = vld [vmem:[%s7 + $0x1c] sm:$0xf]
  %v631 = vld [vmem:[%s7 + $0x20] sm:$0xf]
  %v632 = vld [vmem:[%s7 + $0x24] sm:$0xf]
  %v633 = vld [vmem:[%s7 + $0x28] sm:$0xf]
  %v634 = vld [vmem:[%s7 + $0x2c] sm:$0xf]
  %v635 = vld [vmem:[%s7 + $0x30] sm:$0xf]
  %v636 = vld [vmem:[%s7 + $0x34] sm:$0xf]
  %v637 = vld [vmem:[%s7 + $0x38] sm:$0xf]
  %v638 = vld [vmem:[%s7 + $0x3c] sm:$0xf]
  %v639 = vld [vmem:[%s8] sm:$0x1]
  %v641 = vperm.slane %v639, 0
  %v659 = vunpack.c.l.b16 %v623
  %v660 = vunpack.c.l.b16 %v624
  %v661 = vunpack.c.l.b16 %v625
  %v662 = vunpack.c.l.b16 %v626
  %v663 = vunpack.c.l.b16 %v627
  %v664 = vunpack.c.l.b16 %v628
  %v665 = vunpack.c.l.b16 %v629
  %v666 = vunpack.c.l.b16 %v630
  %v667 = vunpack.c.l.b16 %v631
  %v668 = vunpack.c.l.b16 %v632
  %v669 = vunpack.c.l.b16 %v633
  %v670 = vunpack.c.l.b16 %v634
  %v671 = vunpack.c.l.b16 %v635
  %v672 = vunpack.c.l.b16 %v636
  %v673 = vunpack.c.l.b16 %v637
  %v674 = vunpack.c.l.b16 %v638
  %v675 = vpack.c.b16 %v660, %v659
  %v676 = vpack.c.b16 %v662, %v661
  %v677 = vpack.c.b16 %v664, %v663
  %v678 = vpack.c.b16 %v666, %v665
  %v679 = vpack.c.b16 %v668, %v667
  %v680 = vpack.c.b16 %v670, %v669
  %v681 = vpack.c.b16 %v672, %v671
  %v682 = vpack.c.b16 %v674, %v673
  %691 = vmatpush.bf16.msra.mxu0 %v682
  %692 = vmatpush.bf16.msra.mxu0 %v681
  %693 = vmatpush.bf16.msra.mxu0 %v680
  %694 = vmatpush.bf16.msra.mxu0 %v679
  %695 = vmatpush.bf16.msra.mxu0 %v678
  %696 = vmatpush.bf16.msra.mxu0 %v677
  %697 = vmatpush.bf16.msra.mxu0 %v676
  %698 = vmatpush.bf16.msra.mxu0 %v675
  %699 = vmatmul.bf16.gmra.mxu0 %v615
  %v700 = vpop.f32.mrf.mxu0
  %v701 = vadd.f32 %v641, %v700
  %v702 = vpop.f32.mrf.mxu0
  %v703 = vadd.f32 %v641, %v702
  %704 = vmatmul.bf16.gmra.mxu0 %v616
  %v705 = vpop.f32.mrf.mxu0
  %v706 = vadd.f32 %v641, %v705
  %v707 = vpop.f32.mrf.mxu0
  %v708 = vadd.f32 %v641, %v707
  %709 = vmatmul.bf16.gmra.mxu0 %v617
  %v710 = vpop.f32.mrf.mxu0
  %v711 = vadd.f32 %v641, %v710
  %v712 = vpop.f32.mrf.mxu0
  %v713 = vadd.f32 %v641, %v712
  %714 = vmatmul.bf16.gmra.mxu0 %v618
  %v715 = vpop.f32.mrf.mxu0
  %v716 = vadd.f32 %v641, %v715
  %v717 = vpop.f32.mrf.mxu0
  %v718 = vadd.f32 %v641, %v717
  %719 = vmatmul.bf16.gmra.mxu0 %v619
  %v720 = vpop.f32.mrf.mxu0
  %v721 = vadd.f32 %v641, %v720
  %v722 = vpop.f32.mrf.mxu0
  %v723 = vadd.f32 %v641, %v722
  %724 = vmatmul.bf16.gmra.mxu0 %v620
  %v725 = vpop.f32.mrf.mxu0
  %v726 = vadd.f32 %v641, %v725
  %v727 = vpop.f32.mrf.mxu0
  %v728 = vadd.f32 %v641, %v727
  %729 = vmatmul.bf16.gmra.mxu0 %v621
  %v730 = vpop.f32.mrf.mxu0
  %v731 = vadd.f32 %v641, %v730
  %v732 = vpop.f32.mrf.mxu0
  %v733 = vadd.f32 %v641, %v732
  %734 = vmatmul.bf16.gmra.mxu0 %v622
  %v735 = vpop.f32.mrf.mxu0
  %v736 = vadd.f32 %v641, %v735
  %v737 = vpop.f32.mrf.mxu0
  %v738 = vadd.f32 %v641, %v737
  %739 = vdwg.mxu0
  %740 = vst [vmem:[%s9] sm:$0xff] %v701
  %741 = vst [vmem:[%s9 + $0x8] sm:$0xff] %v703
  %742 = vst [vmem:[%s9 + $0x10] sm:$0xff] %v706
  %743 = vst [vmem:[%s9 + $0x18] sm:$0xff] %v708
  %744 = vst [vmem:[%s9 + $0x20] sm:$0xff] %v711
  %745 = vst [vmem:[%s9 + $0x28] sm:$0xff] %v713
  %746 = vst [vmem:[%s9 + $0x30] sm:$0xff] %v716
  %747 = vst [vmem:[%s9 + $0x38] sm:$0xff] %v718
  %748 = vst [vmem:[%s9 + $0x40] sm:$0xff] %v721
  %749 = vst [vmem:[%s9 + $0x48] sm:$0xff] %v723
  %750 = vst [vmem:[%s9 + $0x50] sm:$0xff] %v726
  %751 = vst [vmem:[%s9 + $0x58] sm:$0xff] %v728
  %752 = vst [vmem:[%s9 + $0x60] sm:$0xff] %v731
  %753 = vst [vmem:[%s9 + $0x68] sm:$0xff] %v733
  %754 = vst [vmem:[%s9 + $0x70] sm:$0xff] %v736
  %755 = vst [vmem:[%s9 + $0x78] sm:$0xff] %v738
  // Predicated region
  $region38: #{sage_model_forward.9} parent=0 // pred_check
    _
  $region39: #{sage_model_forward.9} parent=0 // pred_check_branch
    %757 = sbr.rel (0) target = $region41
  $region40: #{sage_model_forward.9} parent=0 // pred_region
    _
  $region41: #{sage_model_forward.9} parent=0 // pred_fallthru
    _
  // Predicated region
  $region42: #{sage_model_forward.9} parent=0 // pred_check
    _
  $region43: #{sage_model_forward.9} parent=0 // pred_check_branch
    %759 = sbr.rel (0) target = $region45
  $region44: #{sage_model_forward.9} parent=0 // pred_region
    _
  $region45: #{sage_model_forward.9} parent=0 // pred_fallthru
    _

</llo_original>
